<compile_context>
chip_gen: v7x
topology: tpu7x:2x2x1
jax: 0.10.0
libtpu: 0.0.40
codegen_flags: <defaults>
</compile_context>

<pallas_src>
import math
import functools

import jax
import jax.numpy as jnp
from jax import lax
from jax.experimental import pallas as pl
from jax.experimental.pallas import tpu as pltpu


# Raise the scoped-VMEM limit (defaults 16/32 MiB) but stay within this chip's
# physical VMEM so the same code runs on v5e / v6e / v7x.
try:
    _VMEM_LIMIT = min(int(pltpu.get_tpu_info().vmem_capacity_bytes * 3 // 4),
                      96 * 1024 * 1024)
except Exception:  # pragma: no cover - fall back to the compiler default
    _VMEM_LIMIT = None


def _compiler_params(dims):
    return pltpu.CompilerParams(dimension_semantics=dims,
                                vmem_limit_bytes=_VMEM_LIMIT)


def _tile(n, target):
    """Largest multiple-of-8 divisor of n that is <= target, else n (full dim)."""
    if n <= target:
        return n
    t = (target // 8) * 8
    while t >= 8:
        if n % t == 0:
            return t
        t -= 8
    return n


# ---------------------------------------------------------------------------
# Param prep (called once, outside jit): transpose to right-multiply layout,
# fold the 1/sqrt(d_per_head) softmax scale into W_q / b_q.
# ---------------------------------------------------------------------------
def prepare_params(raw, n_heads):
    D = raw["W_q_w"].shape[0]
    dh = D // n_heads
    scale = 1.0 / math.sqrt(dh)
    return {
        "W_qT": jnp.transpose(raw["W_q_w"]) * scale,
        "b_q": (raw["W_q_b"] * scale).reshape(1, D),
        "W_kT": jnp.transpose(raw["W_k_w"]),
        "b_k": raw["W_k_b"].reshape(1, D),
        "W_vT": jnp.transpose(raw["W_v_w"]),
        "b_v": raw["W_v_b"].reshape(1, D),
        "W_oT": jnp.transpose(raw["W_o_w"]),
        "b_o": raw["W_o_b"].reshape(1, D),
    }


# ---------------------------------------------------------------------------
# Kernel 1: fused QKV projection (+ optional RoPE) -> per-head (B,H,S,dh)
# ---------------------------------------------------------------------------
def _qkv_kernel(*refs, n_heads, dh, rope_on):
    if rope_on:
        (xq_ref, xk_ref, xv_ref, wq_ref, wk_ref, wv_ref,
         bq_ref, bk_ref, bv_ref, cos_ref, slo_ref, shi_ref,
         qo_ref, ko_ref, vo_ref) = refs
    else:
        (xq_ref, xk_ref, xv_ref, wq_ref, wk_ref, wv_ref,
         bq_ref, bk_ref, bv_ref,
         qo_ref, ko_ref, vo_ref) = refs

    # Full-width (TS, D) @ (D, D) matmuls: N = D keeps the MXU lanes busy.
    def proj(x_ref, w_ref, b_ref):
        return jnp.dot(x_ref[0], w_ref[...],
                       preferred_element_type=jnp.float32) + b_ref[...]

    q = proj(xq_ref, wq_ref, bq_ref)   # (TS, D); already scaled by 1/sqrt(dh)
    k = proj(xk_ref, wk_ref, bk_ref)
    v = proj(xv_ref, wv_ref, bv_ref)

    if rope_on:
        D = q.shape[-1]
        half = dh // 2
        cos = cos_ref[...]
        slo = slo_ref[...]   # -sin on each head's first half, 0 elsewhere
        shi = shi_ref[...]   # +sin on each head's second half, 0 elsewhere

        # TODO(synk): swap the concat-based lane rotations for pltpu.roll once its
        # rotation-direction convention is validated for this flat (TS,D) layout.
        def rope(x):
            x_lo = jnp.concatenate([x[:, half:], x[:, :half]], axis=-1)          # x[(p+half) mod D]
            x_hi = jnp.concatenate([x[:, D - half:], x[:, :D - half]], axis=-1)  # x[(p-half) mod D]
            return x * cos + x_lo * slo + x_hi * shi

        q = rope(q)
        k = rope(k)

    # Scatter into per-head layout (the split_heads permute) with static stores.
    for h in range(n_heads):
        lo = h * dh
        qo_ref[0, h] = q[:, lo:lo + dh]
        ko_ref[0, h] = k[:, lo:lo + dh]
        vo_ref[0, h] = v[:, lo:lo + dh]


def pallas_qkv_heads(Q, K, V, params, *, n_heads, rope_tabs):
    B, S, D = Q.shape
    dh = D // n_heads
    TS = _tile(S, 256)
    nS = S // TS
    rope_on = rope_tabs is not None

    x_spec = pl.BlockSpec((1, TS, D), lambda b, s: (b, s, 0))
    # TODO(synk): for D >~ 1.4K on v7x (64 MiB VMEM) add pipeline_mode=pl.Buffered(1)
    # or a K-tiling grid axis for these resident weights.
    w_spec = pl.BlockSpec((D, D), lambda b, s: (0, 0))
    b_spec = pl.BlockSpec((1, D), lambda b, s: (0, 0))
    out_spec = pl.BlockSpec((1, n_heads, TS, dh), lambda b, s: (b, 0, s, 0))

    in_specs = [x_spec, x_spec, x_spec, w_spec, w_spec, w_spec,
                b_spec, b_spec, b_spec]
    args = [Q, K, V,
            params["W_qT"], params["W_kT"], params["W_vT"],
            params["b_q"], params["b_k"], params["b_v"]]
    if rope_on:
        t_spec = pl.BlockSpec((TS, D), lambda b, s: (s, 0))
        in_specs += [t_spec, t_spec, t_spec]
        args += list(rope_tabs)

    kernel = functools.partial(_qkv_kernel, n_heads=n_heads, dh=dh, rope_on=rope_on)
    out_shape = tuple(jax.ShapeDtypeStruct((B, n_heads, S, dh), jnp.float32)
                      for _ in range(3))
    return pl.pallas_call(
        kernel,
        out_shape=out_shape,
        grid=(B, nS),
        in_specs=in_specs,
        out_specs=(out_spec, out_spec, out_spec),
        compiler_params=_compiler_params(("parallel", "parallel")),
    )(*args)


# ---------------------------------------------------------------------------
# Kernel 2: masked attention, tiled over query blocks, K/V resident per head,
#           int8 mask shared across heads, optional attention-weights output.
# ---------------------------------------------------------------------------
def _attn_kernel(*refs, use_mask, return_attn):
    idx = 3
    q_ref, k_ref, v_ref = refs[0], refs[1], refs[2]
    mask_ref = None
    if use_mask:
        mask_ref = refs[idx]
        idx += 1
    o_ref = refs[idx]
    idx += 1
    attn_ref = refs[idx] if return_attn else None

    q = q_ref[0]          # (TQ, dh), pre-scaled by 1/sqrt(dh) via weight folding
    k = k_ref[0]          # (S, dh)
    v = v_ref[0]          # (S, dh)

    dn = (((1,), (1,)), ((), ()))              # q @ k.T without materializing k.T
    score = lax.dot_general(q, k, dn, preferred_element_type=jnp.float32)
    if use_mask:
        score = jnp.where(mask_ref[0] != 0, score, -jnp.inf)

    m = jnp.max(score, axis=-1, keepdims=True)
    e = jnp.exp(score - m)
    denom = jnp.sum(e, axis=-1, keepdims=True)
    p = e * pl.reciprocal(denom)               # EUP reciprocal (exact path)

    if return_attn:
        # TODO(synk): optionally emit attn as bf16 to halve the dominant HBM write.
        attn_ref[0] = p
    o_ref[0] = jnp.dot(p, v, preferred_element_type=jnp.float32)


def pallas_attention(q, k, v, mask, *, B, return_attn):
    BH, S, dh = q.shape
    TQ = _tile(S, 128)     # 128 cap keeps the working set inside v7x's 64 MiB VMEM
    nQ = S // TQ
    use_mask = mask is not None

    in_specs = [
        pl.BlockSpec((1, TQ, dh), lambda i, j: (i, j, 0)),
        pl.BlockSpec((1, S, dh), lambda i, j: (i, 0, 0)),   # K resident across j
        pl.BlockSpec((1, S, dh), lambda i, j: (i, 0, 0)),   # V resident across j
    ]
    args = [q, k, v]
    if use_mask:
        # torch: score[i] gets valid_lens.repeat(n_heads,1,1)[i] == valid_lens[i % B]
        in_specs.append(pl.BlockSpec((1, TQ, S), lambda i, j: (i % B, j, 0)))
        args.append(mask)

    out_shapes = [jax.ShapeDtypeStruct((BH, S, dh), jnp.float32)]
    out_specs = [pl.BlockSpec((1, TQ, dh), lambda i, j: (i, j, 0))]
    if return_attn:
        out_shapes.append(jax.ShapeDtypeStruct((BH, S, S), jnp.float32))
        out_specs.append(pl.BlockSpec((1, TQ, S), lambda i, j: (i, j, 0)))

    kernel = functools.partial(_attn_kernel, use_mask=use_mask,
                               return_attn=return_attn)
    res = pl.pallas_call(
        kernel,
        out_shape=tuple(out_shapes),
        grid=(BH, nQ),
        in_specs=in_specs,
        out_specs=tuple(out_specs),
        compiler_params=_compiler_params(("parallel", "parallel")),
    )(*args)
    # TODO(synk): flash-style K/V tiling (online softmax) for the return_attn=False
    # path once S*dh no longer fits VMEM.
    return res if return_attn else res[0]


# ---------------------------------------------------------------------------
# Kernel 3: output projection W_o fused with the head merge (single K=D GEMM)
# ---------------------------------------------------------------------------
def _out_proj_kernel(ctx_ref, wt_ref, b_ref, o_ref, *, n_heads):
    parts = [ctx_ref[0, h] for h in range(n_heads)]        # H x (TS, dh)
    ctx = jnp.concatenate(parts, axis=-1)                  # (TS, D) merge_heads, in-register
    o_ref[0] = jnp.dot(ctx, wt_ref[...],
                       preferred_element_type=jnp.float32) + b_ref[...]


def pallas_out_proj(ctx, w_oT, b_o):
    B, H, S, dh = ctx.shape
    D = H * dh
    TS = _tile(S, 256)
    nS = S // TS
    kernel = functools.partial(_out_proj_kernel, n_heads=H)
    return pl.pallas_call(
        kernel,
        out_shape=jax.ShapeDtypeStruct((B, S, D), jnp.float32),
        grid=(B, nS),
        in_specs=[
            pl.BlockSpec((1, H, TS, dh), lambda b, s: (b, 0, s, 0)),
            pl.BlockSpec((D, D), lambda b, s: (0, 0)),
            pl.BlockSpec((1, D), lambda b, s: (0, 0)),
        ],
        out_specs=pl.BlockSpec((1, TS, D), lambda b, s: (b, s, 0)),
        compiler_params=_compiler_params(("parallel", "parallel")),
    )(ctx, w_oT, b_o)


# ---------------------------------------------------------------------------
# Full module forward
# ---------------------------------------------------------------------------
@functools.partial(jax.jit,
                   static_argnames=("n_heads", "rope_on", "base", "return_attn"))
def masked_mha_forward(params, Q, K, V, valid_lens=None, *, n_heads,
                       rope_on=False, base=10000, return_attn=True):
    B, S, D = Q.shape
    dh = D // n_heads

    rope_tabs = None
    if rope_on:
        half = dh // 2
        # NOTE: exponent divides by d_model (not d_per_head), matching the torch code.
        theta = 1.0 / (base ** (jnp.arange(0, dh, 2, dtype=jnp.float32) / D))
        it = jnp.arange(S, dtype=jnp.float32)[:, None] * theta[None, :]
        it2 = jnp.concatenate([it, it], axis=1)                      # (S, dh)
        cos_h, sin_h = jnp.cos(it2), jnp.sin(it2)
        # Fold rotate_half's sign and the half-selection into two sin tables.
        sin_lo = jnp.concatenate(
            [-sin_h[:, :half], jnp.zeros((S, dh - half), jnp.float32)], axis=1)
        sin_hi = jnp.concatenate(
            [jnp.zeros((S, half), jnp.float32), sin_h[:, half:]], axis=1)
        rope_tabs = (jnp.tile(cos_h, (1, n_heads)),
                     jnp.tile(sin_lo, (1, n_heads)),
                     jnp.tile(sin_hi, (1, n_heads)))

    q_h, k_h, v_h = pallas_qkv_heads(Q, K, V, params, n_heads=n_heads,
                                     rope_tabs=rope_tabs)

    mask = None if valid_lens is None else (valid_lens != 0).astype(jnp.int8)

    BH = B * n_heads
    res = pallas_attention(q_h.reshape(BH, S, dh),     # free contiguous reshapes
                           k_h.reshape(BH, S, dh),
                           v_h.reshape(BH, S, dh),
                           mask, B=B, return_attn=return_attn)
    if return_attn:
        ctx, attn = res
    else:
        ctx, attn = res, None

    out = pallas_out_proj(ctx.reshape(B, n_heads, S, dh),
                          params["W_oT"], params["b_o"])
    return (out, attn) if return_attn else out


# ---------------------------------------------------------------------------
# Pure-JAX reference (mirrors the torch forward, for verification only)
# ---------------------------------------------------------------------------
def reference_forward(params, Q, K, V, valid_lens, *, n_heads, rope_on, base):
    B, S, D = Q.shape
    dh = D // n_heads

    def lin(x, w, b):
        return x @ w.T + b

    def split_heads(x):
        return (x.reshape(B, S, n_heads, dh)
                 .transpose(0, 2, 1, 3)
                 .reshape(B * n_heads, S, dh))

    q = split_heads(lin(Q, params["W_q_w"], params["W_q_b"]))
    k = split_heads(lin(K, params["W_k_w"], params["W_k_b"]))
    v = split_heads(lin(V, params["W_v_w"], params["W_v_b"]))

    if rope_on:
        theta = 1.0 / (base ** (jnp.arange(0, dh, 2, dtype=jnp.float32) / D))
        idx_theta = jnp.arange(S, dtype=jnp.float32)[:, None] * theta[None, :]
        it2 = jnp.concatenate([idx_theta, idx_theta], axis=1)
        cos, sin = jnp.cos(it2), jnp.sin(it2)

        def rot(x):
            h = x.shape[-1] // 2
            return jnp.concatenate([-x[..., h:], x[..., :h]], axis=-1)

        q = q * cos + rot(q) * sin
        k = k * cos + rot(k) * sin

    score = jnp.einsum("bqd,bkd->bqk", q, k) / math.sqrt(dh)
    if valid_lens is not None:
        mask = jnp.tile(valid_lens.astype(bool), (n_heads, 1, 1))
        score = jnp.where(mask, score, -jnp.inf)
    attn = jax.nn.softmax(score, axis=-1)
    out = jnp.einsum("bqk,bkd->bqd", attn, v)
    out = (out.reshape(B, n_heads, S, dh)
              .transpose(0, 2, 1, 3)
              .reshape(B, S, D))
    out = lin(out, params["W_o_w"], params["W_o_b"])
    return out, attn


# ---------------------------------------------------------------------------
if __name__ == "__main__":
    B, S, D, H = 2, 8, 32, 4

    key = jax.random.PRNGKey(0)
    keys = jax.random.split(key, 12)

    def init_linear(kw, kb, d):
        bound = 1.0 / math.sqrt(d)
        w = jax.random.uniform(kw, (d, d), jnp.float32, -bound, bound)
        b = jax.random.uniform(kb, (d,), jnp.float32, -bound, bound)
        return w, b

    raw = {}
    raw["W_q_w"], raw["W_q_b"] = init_linear(keys[0], keys[1], D)
    raw["W_k_w"], raw["W_k_b"] = init_linear(keys[2], keys[3], D)
    raw["W_v_w"], raw["W_v_b"] = init_linear(keys[4], keys[5], D)
    raw["W_o_w"], raw["W_o_b"] = init_linear(keys[6], keys[7], D)
    params = prepare_params(raw, n_heads=H)

    Q = jax.random.normal(keys[8], (B, S, D), jnp.float32)
    K = jax.random.normal(keys[9], (B, S, D), jnp.float32)
    V = jax.random.normal(keys[10], (B, S, D), jnp.float32)

    # Batch-dependent masks (1 = retain) exercising the head/batch mask mapping;
    # both keep the diagonal so no row is fully masked (avoids NaN rows).
    causal = jnp.tril(jnp.ones((S, S), jnp.int32))
    banded = causal * jnp.triu(jnp.ones((S, S), jnp.int32), k=-2)
    valid_lens = jnp.stack([causal, banded], axis=0)   # (B, S, S)

    ok = True
    for vl in (valid_lens, None):
        for rope_on in (False, True):
            out, attn = masked_mha_forward(
                params, Q, K, V, vl, n_heads=H, rope_on=rope_on, base=10000,
                return_attn=True)
            out = jax.block_until_ready(out)
            attn = jax.block_until_ready(attn)

            ref_out, ref_attn = reference_forward(
                raw, Q, K, V, vl, n_heads=H, rope_on=rope_on, base=10000)

            ok &= bool(jnp.allclose(out, ref_out, atol=1e-5, rtol=1e-5))
            ok &= bool(jnp.allclose(attn, ref_attn, atol=1e-5, rtol=1e-5))
            ok &= out.shape == (B, S, D)
            ok &= attn.shape == (B * H, S, S)

    # Perf path: attention-weights output compiled out entirely.
    out_only = masked_mha_forward(params, Q, K, V, valid_lens, n_heads=H,
                                  rope_on=True, base=10000, return_attn=False)
    out_only = jax.block_until_ready(out_only)
    ref_out, _ = reference_forward(raw, Q, K, V, valid_lens, n_heads=H,
                                   rope_on=True, base=10000)
    ok &= bool(jnp.allclose(out_only, ref_out, atol=1e-5, rtol=1e-5))

    print("KERNEL_OK" if ok else "MISMATCH")
</pallas_src>

<mosaic_0001>
module attributes {stable_mosaic.version = 11 : i64} {
  func.func @_out_proj_kernel(%arg0: i32, %arg1: i32, %arg2: memref<1x4x8x8xf32, #tpu.memory_space<vmem>>, %arg3: memref<32x32xf32, #tpu.memory_space<vmem>>, %arg4: memref<1x32xf32, #tpu.memory_space<vmem>>, %arg5: memref<1x8x32xf32, #tpu.memory_space<vmem>>) attributes {dimension_semantics = [#tpu.dimension_semantics<parallel>, #tpu.dimension_semantics<parallel>], iteration_bounds = array<i64: 2, 1>, scalar_prefetch = 0 : i64, scratch_operands = 0 : i64, tpu.core_type = #tpu.core_type<tc>, window_params = [{transform_indices = @transform_0, window_bounds = array<i64: 1, 4, 8, 8>}, {pipeline_mode = #tpu.pipeline_mode<synchronous>, transform_indices = @transform_1, window_bounds = array<i64: 32, 32>}, {pipeline_mode = #tpu.pipeline_mode<synchronous>, transform_indices = @transform_2, window_bounds = array<i64: 1, 32>}, {transform_indices = @transform_3, window_bounds = array<i64: 1, 8, 32>}]} {
    %c0 = arith.constant 0 : index
    %c0_0 = arith.constant 0 : index
    %c0_1 = arith.constant 0 : index
    %c0_2 = arith.constant 0 : index
    %0 = vector.load %arg2[%c0, %c0_0, %c0_1, %c0_2] : memref<1x4x8x8xf32, #tpu.memory_space<vmem>>, vector<1x1x8x8xf32>
    %1 = vector.shape_cast %0 : vector<1x1x8x8xf32> to vector<8x8xf32>
    %c0_3 = arith.constant 0 : index
    %c1 = arith.constant 1 : index
    %c0_4 = arith.constant 0 : index
    %c0_5 = arith.constant 0 : index
    %2 = vector.load %arg2[%c0_3, %c1, %c0_4, %c0_5] : memref<1x4x8x8xf32, #tpu.memory_space<vmem>>, vector<1x1x8x8xf32>
    %3 = vector.shape_cast %2 : vector<1x1x8x8xf32> to vector<8x8xf32>
    %c0_6 = arith.constant 0 : index
    %c2 = arith.constant 2 : index
    %c0_7 = arith.constant 0 : index
    %c0_8 = arith.constant 0 : index
    %4 = vector.load %arg2[%c0_6, %c2, %c0_7, %c0_8] : memref<1x4x8x8xf32, #tpu.memory_space<vmem>>, vector<1x1x8x8xf32>
    %5 = vector.shape_cast %4 : vector<1x1x8x8xf32> to vector<8x8xf32>
    %c0_9 = arith.constant 0 : index
    %c3 = arith.constant 3 : index
    %c0_10 = arith.constant 0 : index
    %c0_11 = arith.constant 0 : index
    %6 = vector.load %arg2[%c0_9, %c3, %c0_10, %c0_11] : memref<1x4x8x8xf32, #tpu.memory_space<vmem>>, vector<1x1x8x8xf32>
    %7 = vector.shape_cast %6 : vector<1x1x8x8xf32> to vector<8x8xf32>
    %8 = tpu.concatenate %1, %3, %5, %7 in 1 : vector<8x8xf32>, vector<8x8xf32>, vector<8x8xf32>, vector<8x8xf32> -> vector<8x32xf32>
    %c0_12 = arith.constant 0 : index
    %c0_13 = arith.constant 0 : index
    %9 = vector.load %arg3[%c0_12, %c0_13] : memref<32x32xf32, #tpu.memory_space<vmem>>, vector<32x32xf32>
    %cst = arith.constant dense<0.000000e+00> : vector<8x32xf32>
    %10 = tpu.matmul %8, %9, %cst {dimension_numbers = #tpu.dot_dimension_numbers<[1], [0], [0], [1], [0, 0, 1, 1], [], []>} : vector<8x32xf32>, vector<32x32xf32>, vector<8x32xf32> -> vector<8x32xf32>
    %c0_14 = arith.constant 0 : index
    %c0_15 = arith.constant 0 : index
    %11 = vector.load %arg4[%c0_14, %c0_15] : memref<1x32xf32, #tpu.memory_space<vmem>>, vector<1x32xf32>
    %12 = vector.broadcast %11 : vector<1x32xf32> to vector<8x32xf32>
    %13 = arith.addf %10, %12 : vector<8x32xf32>
    %c0_16 = arith.constant 0 : index
    %c0_17 = arith.constant 0 : index
    %c0_18 = arith.constant 0 : index
    %14 = vector.load %arg5[%c0_16, %c0_17, %c0_18] : memref<1x8x32xf32, #tpu.memory_space<vmem>>, vector<1x8x32xf32>
    %15 = vector.shape_cast %14 : vector<1x8x32xf32> to vector<8x32xf32>
    %16 = vector.shape_cast %13 : vector<8x32xf32> to vector<1x8x32xf32>
    tpu.vector_store %arg5[%c0_16, %c0_17, %c0_18], %16 {strides = array<i32>} : memref<1x8x32xf32, #tpu.memory_space<vmem>>, vector<1x8x32xf32>,
    return
  }
  func.func @transform_0(%arg0: i32, %arg1: i32) -> (i32, i32, i32, i32) {
    %c0_i32 = arith.constant 0 : i32
    %c0_i32_0 = arith.constant 0 : i32
    %c0_i32_1 = arith.constant 0 : i32
    return %arg0, %c0_i32, %arg1, %c0_i32_0 : i32, i32, i32, i32
  }
  func.func @transform_1(%arg0: i32, %arg1: i32) -> (i32, i32) {
    %c0_i32 = arith.constant 0 : i32
    %c0_i32_0 = arith.constant 0 : i32
    %c0_i32_1 = arith.constant 0 : i32
    return %c0_i32, %c0_i32_0 : i32, i32
  }
  func.func @transform_2(%arg0: i32, %arg1: i32) -> (i32, i32) {
    %c0_i32 = arith.constant 0 : i32
    %c0_i32_0 = arith.constant 0 : i32
    %c0_i32_1 = arith.constant 0 : i32
    return %c0_i32, %c0_i32_0 : i32, i32
  }
  func.func @transform_3(%arg0: i32, %arg1: i32) -> (i32, i32, i32) {
    %c0_i32 = arith.constant 0 : i32
    %c0_i32_0 = arith.constant 0 : i32
    return %arg0, %arg1, %c0_i32 : i32, i32, i32
  }
}

module attributes {stable_mosaic.version = 11 : i64} {
  func.func @_attn_kernel(%arg0: i32, %arg1: i32, %arg2: memref<1x8x8xf32, #tpu.memory_space<vmem>>, %arg3: memref<1x8x8xf32, #tpu.memory_space<vmem>>, %arg4: memref<1x8x8xf32, #tpu.memory_space<vmem>>, %arg5: memref<1x8x8xi8, #tpu.memory_space<vmem>>, %arg6: memref<1x8x8xf32, #tpu.memory_space<vmem>>, %arg7: memref<1x8x8xf32, #tpu.memory_space<vmem>>) attributes {dimension_semantics = [#tpu.dimension_semantics<parallel>, #tpu.dimension_semantics<parallel>], iteration_bounds = array<i64: 8, 1>, scalar_prefetch = 0 : i64, scratch_operands = 0 : i64, tpu.core_type = #tpu.core_type<tc>, window_params = [{transform_indices = @transform_0, window_bounds = array<i64: 1, 8, 8>}, {transform_indices = @transform_1, window_bounds = array<i64: 1, 8, 8>}, {transform_indices = @transform_2, window_bounds = array<i64: 1, 8, 8>}, {transform_indices = @transform_3, window_bounds = array<i64: 1, 8, 8>}, {transform_indices = @transform_4, window_bounds = array<i64: 1, 8, 8>}, {transform_indices = @transform_5, window_bounds = array<i64: 1, 8, 8>}]} {
    %c0 = arith.constant 0 : index
    %c0_0 = arith.constant 0 : index
    %c0_1 = arith.constant 0 : index
    %0 = vector.load %arg2[%c0, %c0_0, %c0_1] : memref<1x8x8xf32, #tpu.memory_space<vmem>>, vector<1x8x8xf32>
    %1 = vector.shape_cast %0 : vector<1x8x8xf32> to vector<8x8xf32>
    %c0_2 = arith.constant 0 : index
    %c0_3 = arith.constant 0 : index
    %c0_4 = arith.constant 0 : index
    %2 = vector.load %arg3[%c0_2, %c0_3, %c0_4] : memref<1x8x8xf32, #tpu.memory_space<vmem>>, vector<1x8x8xf32>
    %3 = vector.shape_cast %2 : vector<1x8x8xf32> to vector<8x8xf32>
    %c0_5 = arith.constant 0 : index
    %c0_6 = arith.constant 0 : index
    %c0_7 = arith.constant 0 : index
    %4 = vector.load %arg4[%c0_5, %c0_6, %c0_7] : memref<1x8x8xf32, #tpu.memory_space<vmem>>, vector<1x8x8xf32>
    %5 = vector.shape_cast %4 : vector<1x8x8xf32> to vector<8x8xf32>
    %cst = arith.constant dense<0.000000e+00> : vector<8x8xf32>
    %6 = tpu.matmul %1, %3, %cst {dimension_numbers = #tpu.dot_dimension_numbers<[1], [1], [0], [0], [0, 0, 1, 0], [], []>} : vector<8x8xf32>, vector<8x8xf32>, vector<8x8xf32> -> vector<8x8xf32>
    %c0_8 = arith.constant 0 : index
    %c0_9 = arith.constant 0 : index
    %c0_10 = arith.constant 0 : index
    %7 = vector.load %arg5[%c0_8, %c0_9, %c0_10] : memref<1x8x8xi8, #tpu.memory_space<vmem>>, vector<1x8x8xi8>
    %8 = vector.shape_cast %7 : vector<1x8x8xi8> to vector<8x8xi8>
    %c0_i8 = arith.constant 0 : i8
    %9 = vector.broadcast %c0_i8 : i8 to vector<8x8xi8>
    %10 = arith.cmpi ne, %8, %9 : vector<8x8xi8>
    %cst_11 = arith.constant 0xFF800000 : f32
    %11 = vector.broadcast %cst_11 : f32 to vector<8x8xf32>
    %12 = arith.select %10, %6, %11 : vector<8x8xi1>, vector<8x8xf32>
    %cst_12 = arith.constant dense<0xFF800000> : vector<8xf32>
    %13 = vector.multi_reduction <maximumf>, %12, %cst_12 [1] : vector<8x8xf32> to vector<8xf32>
    %14 = vector.shape_cast %13 : vector<8xf32> to vector<8x1xf32>
    %15 = vector.broadcast %14 : vector<8x1xf32> to vector<8x8xf32>
    %16 = arith.subf %12, %15 : vector<8x8xf32>
    %17 = math.exp %16 : vector<8x8xf32>
    %cst_13 = arith.constant dense<0.000000e+00> : vector<8xf32>
    %18 = vector.multi_reduction <add>, %17, %cst_13 [1] : vector<8x8xf32> to vector<8xf32>
    %19 = vector.shape_cast %18 : vector<8xf32> to vector<8x1xf32>
    %20 = tpu.reciprocal %19 : vector<8x1xf32> -> vector<8x1xf32>
    %21 = vector.broadcast %20 : vector<8x1xf32> to vector<8x8xf32>
    %22 = arith.mulf %17, %21 : vector<8x8xf32>
    %c0_14 = arith.constant 0 : index
    %c0_15 = arith.constant 0 : index
    %c0_16 = arith.constant 0 : index
    %23 = vector.load %arg7[%c0_14, %c0_15, %c0_16] : memref<1x8x8xf32, #tpu.memory_space<vmem>>, vector<1x8x8xf32>
    %24 = vector.shape_cast %23 : vector<1x8x8xf32> to vector<8x8xf32>
    %25 = vector.shape_cast %22 : vector<8x8xf32> to vector<1x8x8xf32>
    tpu.vector_store %arg7[%c0_14, %c0_15, %c0_16], %25 {strides = array<i32>} : memref<1x8x8xf32, #tpu.memory_space<vmem>>, vector<1x8x8xf32>,
    %cst_17 = arith.constant dense<0.000000e+00> : vector<8x8xf32>
    %26 = tpu.matmul %22, %5, %cst_17 {dimension_numbers = #tpu.dot_dimension_numbers<[1], [0], [0], [1], [0, 0, 1, 1], [], []>} : vector<8x8xf32>, vector<8x8xf32>, vector<8x8xf32> -> vector<8x8xf32>
    %c0_18 = arith.constant 0 : index
    %c0_19 = arith.constant 0 : index
    %c0_20 = arith.constant 0 : index
    %27 = vector.load %arg6[%c0_18, %c0_19, %c0_20] : memref<1x8x8xf32, #tpu.memory_space<vmem>>, vector<1x8x8xf32>
    %28 = vector.shape_cast %27 : vector<1x8x8xf32> to vector<8x8xf32>
    %29 = vector.shape_cast %26 : vector<8x8xf32> to vector<1x8x8xf32>
    tpu.vector_store %arg6[%c0_18, %c0_19, %c0_20], %29 {strides = array<i32>} : memref<1x8x8xf32, #tpu.memory_space<vmem>>, vector<1x8x8xf32>,
    return
  }
  func.func @transform_0(%arg0: i32, %arg1: i32) -> (i32, i32, i32) {
    %c0_i32 = arith.constant 0 : i32
    %c0_i32_0 = arith.constant 0 : i32
    return %arg0, %arg1, %c0_i32 : i32, i32, i32
  }
  func.func @transform_1(%arg0: i32, %arg1: i32) -> (i32, i32, i32) {
    %c0_i32 = arith.constant 0 : i32
    %c0_i32_0 = arith.constant 0 : i32
    %c0_i32_1 = arith.constant 0 : i32
    return %arg0, %c0_i32, %c0_i32_0 : i32, i32, i32
  }
  func.func @transform_2(%arg0: i32, %arg1: i32) -> (i32, i32, i32) {
    %c0_i32 = arith.constant 0 : i32
    %c0_i32_0 = arith.constant 0 : i32
    %c0_i32_1 = arith.constant 0 : i32
    return %arg0, %c0_i32, %c0_i32_0 : i32, i32, i32
  }
  func.func @transform_3(%arg0: i32, %arg1: i32) -> (i32, i32, i32) {
    %c2_i32 = arith.constant 2 : i32
    %c0_i32 = arith.constant 0 : i32
    %0 = arith.cmpi eq, %c2_i32, %c0_i32 : i32
    %c1_i32 = arith.constant 1 : i32
    %1 = arith.select %0, %c1_i32, %c2_i32 : i32
    %2 = arith.remsi %arg0, %1 : i32
    %c0_i32_0 = arith.constant 0 : i32
    %3 = arith.cmpi ne, %2, %c0_i32_0 : i32
    %c0_i32_1 = arith.constant 0 : i32
    %4 = arith.cmpi slt, %2, %c0_i32_1 : i32
    %c0_i32_2 = arith.constant 0 : i32
    %5 = arith.cmpi slt, %1, %c0_i32_2 : i32
    %6 = arith.xori %4, %5 : i1
    %7 = arith.andi %6, %3 : i1
    %8 = arith.addi %2, %1 : i32
    %9 = arith.select %7, %8, %2 : i32
    %c0_i32_3 = arith.constant 0 : i32
    %c0_i32_4 = arith.constant 0 : i32
    return %9, %arg1, %c0_i32_3 : i32, i32, i32
  }
  func.func @transform_4(%arg0: i32, %arg1: i32) -> (i32, i32, i32) {
    %c0_i32 = arith.constant 0 : i32
    %c0_i32_0 = arith.constant 0 : i32
    return %arg0, %arg1, %c0_i32 : i32, i32, i32
  }
  func.func @transform_5(%arg0: i32, %arg1: i32) -> (i32, i32, i32) {
    %c0_i32 = arith.constant 0 : i32
    %c0_i32_0 = arith.constant 0 : i32
    return %arg0, %arg1, %c0_i32 : i32, i32, i32
  }
}

module attributes {stable_mosaic.version = 11 : i64} {
  func.func @_qkv_kernel(%arg0: i32, %arg1: i32, %arg2: memref<1x8x32xf32, #tpu.memory_space<vmem>>, %arg3: memref<1x8x32xf32, #tpu.memory_space<vmem>>, %arg4: memref<1x8x32xf32, #tpu.memory_space<vmem>>, %arg5: memref<32x32xf32, #tpu.memory_space<vmem>>, %arg6: memref<32x32xf32, #tpu.memory_space<vmem>>, %arg7: memref<32x32xf32, #tpu.memory_space<vmem>>, %arg8: memref<1x32xf32, #tpu.memory_space<vmem>>, %arg9: memref<1x32xf32, #tpu.memory_space<vmem>>, %arg10: memref<1x32xf32, #tpu.memory_space<vmem>>, %arg11: memref<1x4x8x8xf32, #tpu.memory_space<vmem>>, %arg12: memref<1x4x8x8xf32, #tpu.memory_space<vmem>>, %arg13: memref<1x4x8x8xf32, #tpu.memory_space<vmem>>) attributes {dimension_semantics = [#tpu.dimension_semantics<parallel>, #tpu.dimension_semantics<parallel>], iteration_bounds = array<i64: 2, 1>, scalar_prefetch = 0 : i64, scratch_operands = 0 : i64, tpu.core_type = #tpu.core_type<tc>, window_params = [{transform_indices = @transform_0, window_bounds = array<i64: 1, 8, 32>}, {transform_indices = @transform_1, window_bounds = array<i64: 1, 8, 32>}, {transform_indices = @transform_2, window_bounds = array<i64: 1, 8, 32>}, {pipeline_mode = #tpu.pipeline_mode<synchronous>, transform_indices = @transform_3, window_bounds = array<i64: 32, 32>}, {pipeline_mode = #tpu.pipeline_mode<synchronous>, transform_indices = @transform_4, window_bounds = array<i64: 32, 32>}, {pipeline_mode = #tpu.pipeline_mode<synchronous>, transform_indices = @transform_5, window_bounds = array<i64: 32, 32>}, {pipeline_mode = #tpu.pipeline_mode<synchronous>, transform_indices = @transform_6, window_bounds = array<i64: 1, 32>}, {pipeline_mode = #tpu.pipeline_mode<synchronous>, transform_indices = @transform_7, window_bounds = array<i64: 1, 32>}, {pipeline_mode = #tpu.pipeline_mode<synchronous>, transform_indices = @transform_8, window_bounds = array<i64: 1, 32>}, {transform_indices = @transform_9, window_bounds = array<i64: 1, 4, 8, 8>}, {transform_indices = @transform_10, window_bounds = array<i64: 1, 4, 8, 8>}, {transform_indices = @transform_11, window_bounds = array<i64: 1, 4, 8, 8>}]} {
    %c0 = arith.constant 0 : index
    %c0_0 = arith.constant 0 : index
    %c0_1 = arith.constant 0 : index
    %0 = vector.load %arg2[%c0, %c0_0, %c0_1] : memref<1x8x32xf32, #tpu.memory_space<vmem>>, vector<1x8x32xf32>
    %1 = vector.shape_cast %0 : vector<1x8x32xf32> to vector<8x32xf32>
    %c0_2 = arith.constant 0 : index
    %c0_3 = arith.constant 0 : index
    %2 = vector.load %arg5[%c0_2, %c0_3] : memref<32x32xf32, #tpu.memory_space<vmem>>, vector<32x32xf32>
    %cst = arith.constant dense<0.000000e+00> : vector<8x32xf32>
    %3 = tpu.matmul %1, %2, %cst {dimension_numbers = #tpu.dot_dimension_numbers<[1], [0], [0], [1], [0, 0, 1, 1], [], []>} : vector<8x32xf32>, vector<32x32xf32>, vector<8x32xf32> -> vector<8x32xf32>
    %c0_4 = arith.constant 0 : index
    %c0_5 = arith.constant 0 : index
    %4 = vector.load %arg8[%c0_4, %c0_5] : memref<1x32xf32, #tpu.memory_space<vmem>>, vector<1x32xf32>
    %5 = vector.broadcast %4 : vector<1x32xf32> to vector<8x32xf32>
    %6 = arith.addf %3, %5 : vector<8x32xf32>
    %c0_6 = arith.constant 0 : index
    %c0_7 = arith.constant 0 : index
    %c0_8 = arith.constant 0 : index
    %7 = vector.load %arg3[%c0_6, %c0_7, %c0_8] : memref<1x8x32xf32, #tpu.memory_space<vmem>>, vector<1x8x32xf32>
    %8 = vector.shape_cast %7 : vector<1x8x32xf32> to vector<8x32xf32>
    %c0_9 = arith.constant 0 : index
    %c0_10 = arith.constant 0 : index
    %9 = vector.load %arg6[%c0_9, %c0_10] : memref<32x32xf32, #tpu.memory_space<vmem>>, vector<32x32xf32>
    %cst_11 = arith.constant dense<0.000000e+00> : vector<8x32xf32>
    %10 = tpu.matmul %8, %9, %cst_11 {dimension_numbers = #tpu.dot_dimension_numbers<[1], [0], [0], [1], [0, 0, 1, 1], [], []>} : vector<8x32xf32>, vector<32x32xf32>, vector<8x32xf32> -> vector<8x32xf32>
    %c0_12 = arith.constant 0 : index
    %c0_13 = arith.constant 0 : index
    %11 = vector.load %arg9[%c0_12, %c0_13] : memref<1x32xf32, #tpu.memory_space<vmem>>, vector<1x32xf32>
    %12 = vector.broadcast %11 : vector<1x32xf32> to vector<8x32xf32>
    %13 = arith.addf %10, %12 : vector<8x32xf32>
    %c0_14 = arith.constant 0 : index
    %c0_15 = arith.constant 0 : index
    %c0_16 = arith.constant 0 : index
    %14 = vector.load %arg4[%c0_14, %c0_15, %c0_16] : memref<1x8x32xf32, #tpu.memory_space<vmem>>, vector<1x8x32xf32>
    %15 = vector.shape_cast %14 : vector<1x8x32xf32> to vector<8x32xf32>
    %c0_17 = arith.constant 0 : index
    %c0_18 = arith.constant 0 : index
    %16 = vector.load %arg7[%c0_17, %c0_18] : memref<32x32xf32, #tpu.memory_space<vmem>>, vector<32x32xf32>
    %cst_19 = arith.constant dense<0.000000e+00> : vector<8x32xf32>
    %17 = tpu.matmul %15, %16, %cst_19 {dimension_numbers = #tpu.dot_dimension_numbers<[1], [0], [0], [1], [0, 0, 1, 1], [], []>} : vector<8x32xf32>, vector<32x32xf32>, vector<8x32xf32> -> vector<8x32xf32>
    %c0_20 = arith.constant 0 : index
    %c0_21 = arith.constant 0 : index
    %18 = vector.load %arg10[%c0_20, %c0_21] : memref<1x32xf32, #tpu.memory_space<vmem>>, vector<1x32xf32>
    %19 = vector.broadcast %18 : vector<1x32xf32> to vector<8x32xf32>
    %20 = arith.addf %17, %19 : vector<8x32xf32>
    %21 = vector.extract_strided_slice %6 {offsets = [0, 0], sizes = [8, 8], strides = [1, 1]} : vector<8x32xf32> to vector<8x8xf32>
    %c0_22 = arith.constant 0 : index
    %c0_23 = arith.constant 0 : index
    %c0_24 = arith.constant 0 : index
    %c0_25 = arith.constant 0 : index
    %22 = vector.load %arg11[%c0_22, %c0_23, %c0_24, %c0_25] : memref<1x4x8x8xf32, #tpu.memory_space<vmem>>, vector<1x1x8x8xf32>
    %23 = vector.shape_cast %22 : vector<1x1x8x8xf32> to vector<8x8xf32>
    %24 = vector.shape_cast %21 : vector<8x8xf32> to vector<1x1x8x8xf32>
    tpu.vector_store %arg11[%c0_22, %c0_23, %c0_24, %c0_25], %24 {strides = array<i32>} : memref<1x4x8x8xf32, #tpu.memory_space<vmem>>, vector<1x1x8x8xf32>,
    %25 = vector.extract_strided_slice %13 {offsets = [0, 0], sizes = [8, 8], strides = [1, 1]} : vector<8x32xf32> to vector<8x8xf32>
    %c0_26 = arith.constant 0 : index
    %c0_27 = arith.constant 0 : index
    %c0_28 = arith.constant 0 : index
    %c0_29 = arith.constant 0 : index
    %26 = vector.load %arg12[%c0_26, %c0_27, %c0_28, %c0_29] : memref<1x4x8x8xf32, #tpu.memory_space<vmem>>, vector<1x1x8x8xf32>
    %27 = vector.shape_cast %26 : vector<1x1x8x8xf32> to vector<8x8xf32>
    %28 = vector.shape_cast %25 : vector<8x8xf32> to vector<1x1x8x8xf32>
    tpu.vector_store %arg12[%c0_26, %c0_27, %c0_28, %c0_29], %28 {strides = array<i32>} : memref<1x4x8x8xf32, #tpu.memory_space<vmem>>, vector<1x1x8x8xf32>,
    %29 = vector.extract_strided_slice %20 {offsets = [0, 0], sizes = [8, 8], strides = [1, 1]} : vector<8x32xf32> to vector<8x8xf32>
    %c0_30 = arith.constant 0 : index
    %c0_31 = arith.constant 0 : index
    %c0_32 = arith.constant 0 : index
    %c0_33 = arith.constant 0 : index
    %30 = vector.load %arg13[%c0_30, %c0_31, %c0_32, %c0_33] : memref<1x4x8x8xf32, #tpu.memory_space<vmem>>, vector<1x1x8x8xf32>
    %31 = vector.shape_cast %30 : vector<1x1x8x8xf32> to vector<8x8xf32>
    %32 = vector.shape_cast %29 : vector<8x8xf32> to vector<1x1x8x8xf32>
    tpu.vector_store %arg13[%c0_30, %c0_31, %c0_32, %c0_33], %32 {strides = array<i32>} : memref<1x4x8x8xf32, #tpu.memory_space<vmem>>, vector<1x1x8x8xf32>,
    %33 = vector.extract_strided_slice %6 {offsets = [0, 8], sizes = [8, 8], strides = [1, 1]} : vector<8x32xf32> to vector<8x8xf32>
    %c0_34 = arith.constant 0 : index
    %c1 = arith.constant 1 : index
    %c0_35 = arith.constant 0 : index
    %c0_36 = arith.constant 0 : index
    %34 = vector.load %arg11[%c0_34, %c1, %c0_35, %c0_36] : memref<1x4x8x8xf32, #tpu.memory_space<vmem>>, vector<1x1x8x8xf32>
    %35 = vector.shape_cast %34 : vector<1x1x8x8xf32> to vector<8x8xf32>
    %36 = vector.shape_cast %33 : vector<8x8xf32> to vector<1x1x8x8xf32>
    tpu.vector_store %arg11[%c0_34, %c1, %c0_35, %c0_36], %36 {strides = array<i32>} : memref<1x4x8x8xf32, #tpu.memory_space<vmem>>, vector<1x1x8x8xf32>,
    %37 = vector.extract_strided_slice %13 {offsets = [0, 8], sizes = [8, 8], strides = [1, 1]} : vector<8x32xf32> to vector<8x8xf32>
    %c0_37 = arith.constant 0 : index
    %c1_38 = arith.constant 1 : index
    %c0_39 = arith.constant 0 : index
    %c0_40 = arith.constant 0 : index
    %38 = vector.load %arg12[%c0_37, %c1_38, %c0_39, %c0_40] : memref<1x4x8x8xf32, #tpu.memory_space<vmem>>, vector<1x1x8x8xf32>
    %39 = vector.shape_cast %38 : vector<1x1x8x8xf32> to vector<8x8xf32>
    %40 = vector.shape_cast %37 : vector<8x8xf32> to vector<1x1x8x8xf32>
    tpu.vector_store %arg12[%c0_37, %c1_38, %c0_39, %c0_40], %40 {strides = array<i32>} : memref<1x4x8x8xf32, #tpu.memory_space<vmem>>, vector<1x1x8x8xf32>,
    %41 = vector.extract_strided_slice %20 {offsets = [0, 8], sizes = [8, 8], strides = [1, 1]} : vector<8x32xf32> to vector<8x8xf32>
    %c0_41 = arith.constant 0 : index
    %c1_42 = arith.constant 1 : index
    %c0_43 = arith.constant 0 : index
    %c0_44 = arith.constant 0 : index
    %42 = vector.load %arg13[%c0_41, %c1_42, %c0_43, %c0_44] : memref<1x4x8x8xf32, #tpu.memory_space<vmem>>, vector<1x1x8x8xf32>
    %43 = vector.shape_cast %42 : vector<1x1x8x8xf32> to vector<8x8xf32>
    %44 = vector.shape_cast %41 : vector<8x8xf32> to vector<1x1x8x8xf32>
    tpu.vector_store %arg13[%c0_41, %c1_42, %c0_43, %c0_44], %44 {strides = array<i32>} : memref<1x4x8x8xf32, #tpu.memory_space<vmem>>, vector<1x1x8x8xf32>,
    %45 = vector.extract_strided_slice %6 {offsets = [0, 16], sizes = [8, 8], strides = [1, 1]} : vector<8x32xf32> to vector<8x8xf32>
    %c0_45 = arith.constant 0 : index
    %c2 = arith.constant 2 : index
    %c0_46 = arith.constant 0 : index
    %c0_47 = arith.constant 0 : index
    %46 = vector.load %arg11[%c0_45, %c2, %c0_46, %c0_47] : memref<1x4x8x8xf32, #tpu.memory_space<vmem>>, vector<1x1x8x8xf32>
    %47 = vector.shape_cast %46 : vector<1x1x8x8xf32> to vector<8x8xf32>
    %48 = vector.shape_cast %45 : vector<8x8xf32> to vector<1x1x8x8xf32>
    tpu.vector_store %arg11[%c0_45, %c2, %c0_46, %c0_47], %48 {strides = array<i32>} : memref<1x4x8x8xf32, #tpu.memory_space<vmem>>, vector<1x1x8x8xf32>,
    %49 = vector.extract_strided_slice %13 {offsets = [0, 16], sizes = [8, 8], strides = [1, 1]} : vector<8x32xf32> to vector<8x8xf32>
    %c0_48 = arith.constant 0 : index
    %c2_49 = arith.constant 2 : index
    %c0_50 = arith.constant 0 : index
    %c0_51 = arith.constant 0 : index
    %50 = vector.load %arg12[%c0_48, %c2_49, %c0_50, %c0_51] : memref<1x4x8x8xf32, #tpu.memory_space<vmem>>, vector<1x1x8x8xf32>
    %51 = vector.shape_cast %50 : vector<1x1x8x8xf32> to vector<8x8xf32>
    %52 = vector.shape_cast %49 : vector<8x8xf32> to vector<1x1x8x8xf32>
    tpu.vector_store %arg12[%c0_48, %c2_49, %c0_50, %c0_51], %52 {strides = array<i32>} : memref<1x4x8x8xf32, #tpu.memory_space<vmem>>, vector<1x1x8x8xf32>,
    %53 = vector.extract_strided_slice %20 {offsets = [0, 16], sizes = [8, 8], strides = [1, 1]} : vector<8x32xf32> to vector<8x8xf32>
    %c0_52 = arith.constant 0 : index
    %c2_53 = arith.constant 2 : index
    %c0_54 = arith.constant 0 : index
    %c0_55 = arith.constant 0 : index
    %54 = vector.load %arg13[%c0_52, %c2_53, %c0_54, %c0_55] : memref<1x4x8x8xf32, #tpu.memory_space<vmem>>, vector<1x1x8x8xf32>
    %55 = vector.shape_cast %54 : vector<1x1x8x8xf32> to vector<8x8xf32>
    %56 = vector.shape_cast %53 : vector<8x8xf32> to vector<1x1x8x8xf32>
    tpu.vector_store %arg13[%c0_52, %c2_53, %c0_54, %c0_55], %56 {strides = array<i32>} : memref<1x4x8x8xf32, #tpu.memory_space<vmem>>, vector<1x1x8x8xf32>,
    %57 = vector.extract_strided_slice %6 {offsets = [0, 24], sizes = [8, 8], strides = [1, 1]} : vector<8x32xf32> to vector<8x8xf32>
    %c0_56 = arith.constant 0 : index
    %c3 = arith.constant 3 : index
    %c0_57 = arith.constant 0 : index
    %c0_58 = arith.constant 0 : index
    %58 = vector.load %arg11[%c0_56, %c3, %c0_57, %c0_58] : memref<1x4x8x8xf32, #tpu.memory_space<vmem>>, vector<1x1x8x8xf32>
    %59 = vector.shape_cast %58 : vector<1x1x8x8xf32> to vector<8x8xf32>
    %60 = vector.shape_cast %57 : vector<8x8xf32> to vector<1x1x8x8xf32>
    tpu.vector_store %arg11[%c0_56, %c3, %c0_57, %c0_58], %60 {strides = array<i32>} : memref<1x4x8x8xf32, #tpu.memory_space<vmem>>, vector<1x1x8x8xf32>,
    %61 = vector.extract_strided_slice %13 {offsets = [0, 24], sizes = [8, 8], strides = [1, 1]} : vector<8x32xf32> to vector<8x8xf32>
    %c0_59 = arith.constant 0 : index
    %c3_60 = arith.constant 3 : index
    %c0_61 = arith.constant 0 : index
    %c0_62 = arith.constant 0 : index
    %62 = vector.load %arg12[%c0_59, %c3_60, %c0_61, %c0_62] : memref<1x4x8x8xf32, #tpu.memory_space<vmem>>, vector<1x1x8x8xf32>
    %63 = vector.shape_cast %62 : vector<1x1x8x8xf32> to vector<8x8xf32>
    %64 = vector.shape_cast %61 : vector<8x8xf32> to vector<1x1x8x8xf32>
    tpu.vector_store %arg12[%c0_59, %c3_60, %c0_61, %c0_62], %64 {strides = array<i32>} : memref<1x4x8x8xf32, #tpu.memory_space<vmem>>, vector<1x1x8x8xf32>,
    %65 = vector.extract_strided_slice %20 {offsets = [0, 24], sizes = [8, 8], strides = [1, 1]} : vector<8x32xf32> to vector<8x8xf32>
    %c0_63 = arith.constant 0 : index
    %c3_64 = arith.constant 3 : index
    %c0_65 = arith.constant 0 : index
    %c0_66 = arith.constant 0 : index
    %66 = vector.load %arg13[%c0_63, %c3_64, %c0_65, %c0_66] : memref<1x4x8x8xf32, #tpu.memory_space<vmem>>, vector<1x1x8x8xf32>
    %67 = vector.shape_cast %66 : vector<1x1x8x8xf32> to vector<8x8xf32>
    %68 = vector.shape_cast %65 : vector<8x8xf32> to vector<1x1x8x8xf32>
    tpu.vector_store %arg13[%c0_63, %c3_64, %c0_65, %c0_66], %68 {strides = array<i32>} : memref<1x4x8x8xf32, #tpu.memory_space<vmem>>, vector<1x1x8x8xf32>,
    return
  }
  func.func @transform_0(%arg0: i32, %arg1: i32) -> (i32, i32, i32) {
    %c0_i32 = arith.constant 0 : i32
    %c0_i32_0 = arith.constant 0 : i32
    return %arg0, %arg1, %c0_i32 : i32, i32, i32
  }
  func.func @transform_1(%arg0: i32, %arg1: i32) -> (i32, i32, i32) {
    %c0_i32 = arith.constant 0 : i32
    %c0_i32_0 = arith.constant 0 : i32
    return %arg0, %arg1, %c0_i32 : i32, i32, i32
  }
  func.func @transform_2(%arg0: i32, %arg1: i32) -> (i32, i32, i32) {
    %c0_i32 = arith.constant 0 : i32
    %c0_i32_0 = arith.constant 0 : i32
    return %arg0, %arg1, %c0_i32 : i32, i32, i32
  }
  func.func @transform_3(%arg0: i32, %arg1: i32) -> (i32, i32) {
    %c0_i32 = arith.constant 0 : i32
    %c0_i32_0 = arith.constant 0 : i32
    %c0_i32_1 = arith.constant 0 : i32
    return %c0_i32, %c0_i32_0 : i32, i32
  }
  func.func @transform_4(%arg0: i32, %arg1: i32) -> (i32, i32) {
    %c0_i32 = arith.constant 0 : i32
    %c0_i32_0 = arith.constant 0 : i32
    %c0_i32_1 = arith.constant 0 : i32
    return %c0_i32, %c0_i32_0 : i32, i32
  }
  func.func @transform_5(%arg0: i32, %arg1: i32) -> (i32, i32) {
    %c0_i32 = arith.constant 0 : i32
    %c0_i32_0 = arith.constant 0 : i32
    %c0_i32_1 = arith.constant 0 : i32
    return %c0_i32, %c0_i32_0 : i32, i32
  }
  func.func @transform_6(%arg0: i32, %arg1: i32) -> (i32, i32) {
    %c0_i32 = arith.constant 0 : i32
    %c0_i32_0 = arith.constant 0 : i32
    %c0_i32_1 = arith.constant 0 : i32
    return %c0_i32, %c0_i32_0 : i32, i32
  }
  func.func @transform_7(%arg0: i32, %arg1: i32) -> (i32, i32) {
    %c0_i32 = arith.constant 0 : i32
    %c0_i32_0 = arith.constant 0 : i32
    %c0_i32_1 = arith.constant 0 : i32
    return %c0_i32, %c0_i32_0 : i32, i32
  }
  func.func @transform_8(%arg0: i32, %arg1: i32) -> (i32, i32) {
    %c0_i32 = arith.constant 0 : i32
    %c0_i32_0 = arith.constant 0 : i32
    %c0_i32_1 = arith.constant 0 : i32
    return %c0_i32, %c0_i32_0 : i32, i32
  }
  func.func @transform_9(%arg0: i32, %arg1: i32) -> (i32, i32, i32, i32) {
    %c0_i32 = arith.constant 0 : i32
    %c0_i32_0 = arith.constant 0 : i32
    %c0_i32_1 = arith.constant 0 : i32
    return %arg0, %c0_i32, %arg1, %c0_i32_0 : i32, i32, i32, i32
  }
  func.func @transform_10(%arg0: i32, %arg1: i32) -> (i32, i32, i32, i32) {
    %c0_i32 = arith.constant 0 : i32
    %c0_i32_0 = arith.constant 0 : i32
    %c0_i32_1 = arith.constant 0 : i32
    return %arg0, %c0_i32, %arg1, %c0_i32_0 : i32, i32, i32, i32
  }
  func.func @transform_11(%arg0: i32, %arg1: i32) -> (i32, i32, i32, i32) {
    %c0_i32 = arith.constant 0 : i32
    %c0_i32_0 = arith.constant 0 : i32
    %c0_i32_1 = arith.constant 0 : i32
    return %arg0, %c0_i32, %arg1, %c0_i32_0 : i32, i32, i32, i32
  }
}

</mosaic_0001>

<llo_original>
// kernel: masked_mha_forward.4
$region0: #{masked_mha_forward.4}
  #allocation0 [shape = 'u32[]', space=smem, size = 0x4, offset = 0x4, fixed_abs, tag = 'smem constant byte address 0x4 - core index']
  #allocation1 [shape = 'u32[144,128]{1,0:T(1,128)}', space=vmem, size = 0x12000, scoped, tag = 'internal scratch']
  %s0 = inlined_call_operand.vmem [shape: f32[8,8,8], index: 0, kind: input, shape index: {}]
  %s1 = inlined_call_operand.vmem [shape: f32[8,8,8], index: 1, kind: input, shape index: {}]
  %s2 = inlined_call_operand.vmem [shape: f32[8,8,8], index: 2, kind: input, shape index: {}]
  %s3 = inlined_call_operand.vmem [shape: s8[2,8,8], index: 3, kind: input, shape index: {}]
  %s4 = inlined_call_operand.vmem [shape: f32[8,8,8], index: 4, kind: output, shape index: {0}]
  %s5 = inlined_call_operand.hbm [shape: f32[8,8,8], index: 5, kind: output, shape index: {1}]
  %6 = xla_tuple %s4, %s5
  %s7 = sld [smem:[#allocation0]]
  $region57: #{masked_mha_forward.4} parent=0
    _
  %s9 = ssub.s32 1, %s7
  %s10 = scalar_select 0, %s9, %s7
  $region1: #{masked_mha_forward.4} parent=0
    #allocation2 [shape = 'u8[8192]{0}', space=vmem, size = 0x2000, scoped, tag = 'output window, operand 1']
    #allocation3 [shape = 's32[2]{0}', space=sflag, size = 0x8, scoped, tag = 'scoped memory for masked_mha_forward.4']
    %11 = vsyncpa [#allocation3], 0
    %s12 = scalar_lea.sflag [#allocation3], 1
    %13 = vsyncpa %s12, 0
    loop: start=0, step=1, limit=10
    $region2: #{masked_mha_forward.4} parent=1 // loop_pre_header
      _
    $region3: #{masked_mha_forward.4} parent=1 // loop_header
      %s15 = sphi 0, %s19
      %p16 = scmp.ge.s32.totalorder %s15, 10
      %s22 = sphi 0, %s34
      %s23 = sphi 0, %s30
      %s24 = sphi 0, %s22
      %s25 = sphi 0, %s23
      %s26 = sphi 0, %s24
      %s27 = sphi 0, %s25
      %s39 = sphi 0, %s41
      %s42 = sphi 0, %s39
      %s43 = sphi 0, %s42
      %s59 = sphi 0, %s43
      %s65 = sphi 0, %s67
      %s68 = sphi 0, %s65
      %s69 = sphi 0, %s68
      %s85 = sphi 0, %s69
      %s91 = sphi 0, %s93
      %s94 = sphi 0, %s91
      %s95 = sphi 0, %s94
      %s111 = sphi 0, %s95
      %s143 = sphi 0, %s145
      %s146 = sphi 0, %s143
      %s147 = sphi 0, %s146
      %s163 = sphi 0, %s147
      %s171 = sphi 0, %s173
      %s174 = sphi 0, %s171
      %s175 = sphi 0, %s174
      %s191 = sphi 0, %s175
      %s199 = sphi 0, %s201
      %s202 = sphi 0, %s199
      %s203 = sphi 0, %s202
      %s219 = sphi 0, %s203
    $region4: #{masked_mha_forward.4} parent=1 // loop_header_branch
      %18 = sbr.rel (%p16) target = $region8
    $region5: #{masked_mha_forward.4} parent=1 // loop_body
      %s20 = ssub.s32 %s15, 1
      %s21 = ssub.s32 %s15, 2
      %s28 = sadd.s32 1, %s23
      %p29 = scmp.ge.s32.totalorder %s28, 1
      %s30 = scalar_select %p29, 0, %s28
      %s31 = sadd.s32 1, %s22
      %s32 = scalar_select %p29, %s31, %s22
      %p33 = scmp.ge.s32.totalorder %s32, 8
      %s34 = scalar_select %p33, 0, %s32
      %s35 = ssub.s32 %s22, %s34
      %s36 = ssub.s32 %s23, %s30
      %s37 = sor.u32 %s35, %s36
      %p38 = scmp.eq.s32.totalorder %s37, 0
      %s40 = sadd.s32 %s39, 1
      %s41 = scalar_select %p38, %s39, %s40
      %p44 = pneg %p38
      %p45 = scmp.eq.s32.totalorder %s15, 7
      %p46 = por %p44, %p45
      %p47 = scmp.ne.s32.totalorder %s39, %s42
      %p48 = scmp.eq.s32.totalorder %s15, 0
      %p49 = por %p47, %p48
      %p50 = scmp.ne.s32.totalorder %s39, %s42
      %p51 = scmp.eq.s32.totalorder %s20, 7
      %p52 = por %p50, %p51
      %p53 = scmp.ne.s32.totalorder %s42, %s43
      %p54 = scmp.eq.s32.totalorder %s20, 0
      %p55 = por %p53, %p54
      %p56 = scmp.ne.s32.totalorder %s42, %s43
      %p57 = scmp.eq.s32.totalorder %s21, 7
      %p58 = por %p56, %p57
      %p60 = scmp.ne.s32.totalorder %s43, %s59
      %p61 = scmp.eq.s32.totalorder %s21, 0
      %p62 = por %p60, %p61
      %s63 = ssub.s32 %s22, %s34
      %p64 = scmp.eq.s32.totalorder %s63, 0
      %s66 = sadd.s32 %s65, 1
      %s67 = scalar_select %p64, %s65, %s66
      %p70 = pneg %p64
      %p71 = scmp.eq.s32.totalorder %s15, 7
      %p72 = por %p70, %p71
      %p73 = scmp.ne.s32.totalorder %s65, %s68
      %p74 = scmp.eq.s32.totalorder %s15, 0
      %p75 = por %p73, %p74
      %p76 = scmp.ne.s32.totalorder %s65, %s68
      %p77 = scmp.eq.s32.totalorder %s20, 7
      %p78 = por %p76, %p77
      %p79 = scmp.ne.s32.totalorder %s68, %s69
      %p80 = scmp.eq.s32.totalorder %s20, 0
      %p81 = por %p79, %p80
      %p82 = scmp.ne.s32.totalorder %s68, %s69
      %p83 = scmp.eq.s32.totalorder %s21, 7
      %p84 = por %p82, %p83
      %p86 = scmp.ne.s32.totalorder %s69, %s85
      %p87 = scmp.eq.s32.totalorder %s21, 0
      %p88 = por %p86, %p87
      %s89 = ssub.s32 %s22, %s34
      %p90 = scmp.eq.s32.totalorder %s89, 0
      %s92 = sadd.s32 %s91, 1
      %s93 = scalar_select %p90, %s91, %s92
      %p96 = pneg %p90
      %p97 = scmp.eq.s32.totalorder %s15, 7
      %p98 = por %p96, %p97
      %p99 = scmp.ne.s32.totalorder %s91, %s94
      %p100 = scmp.eq.s32.totalorder %s15, 0
      %p101 = por %p99, %p100
      %p102 = scmp.ne.s32.totalorder %s91, %s94
      %p103 = scmp.eq.s32.totalorder %s20, 7
      %p104 = por %p102, %p103
      %p105 = scmp.ne.s32.totalorder %s94, %s95
      %p106 = scmp.eq.s32.totalorder %s20, 0
      %p107 = por %p105, %p106
      %p108 = scmp.ne.s32.totalorder %s94, %s95
      %p109 = scmp.eq.s32.totalorder %s21, 7
      %p110 = por %p108, %p109
      %p112 = scmp.ne.s32.totalorder %s95, %s111
      %p113 = scmp.eq.s32.totalorder %s21, 0
      %p114 = por %p112, %p113
      %p115 = scmp.lt.s32.totalorder %s22, 0
      %s116 = ssub.s32 0, %s22
      %s117 = scalar_select %p115, %s116, %s22
      %s118 = sand.u32 %s117, 1
      %s119 = ssub.s32 0, %s118
      %s120 = scalar_select %p115, %s119, %s118
      %p121 = scmp.ne.s32.totalorder %s120, 0
      %p122 = scmp.lt.s32.totalorder %s120, 0
      %p123 = pnand %p122, %p121
      %p124 = pneg %p123
      %s125 = sadd.s32 %s120, 2
      %s126 = scalar_select %p124, %s125, %s120
      %p127 = scmp.lt.s32.totalorder %s34, 0
      %s128 = ssub.s32 0, %s34
      %s129 = scalar_select %p127, %s128, %s34
      %s130 = sand.u32 %s129, 1
      %s131 = ssub.s32 0, %s130
      %s132 = scalar_select %p127, %s131, %s130
      %p133 = scmp.ne.s32.totalorder %s132, 0
      %p134 = scmp.lt.s32.totalorder %s132, 0
      %p135 = pnand %p134, %p133
      %p136 = pneg %p135
      %s137 = sadd.s32 %s132, 2
      %s138 = scalar_select %p136, %s137, %s132
      %s139 = ssub.s32 %s126, %s138
      %s140 = ssub.s32 %s23, %s30
      %s141 = sor.u32 %s139, %s140
      %p142 = scmp.eq.s32.totalorder %s141, 0
      %s144 = sadd.s32 %s143, 1
      %s145 = scalar_select %p142, %s143, %s144
      %p148 = pneg %p142
      %p149 = scmp.eq.s32.totalorder %s15, 7
      %p150 = por %p148, %p149
      %p151 = scmp.ne.s32.totalorder %s143, %s146
      %p152 = scmp.eq.s32.totalorder %s15, 0
      %p153 = por %p151, %p152
      %p154 = scmp.ne.s32.totalorder %s143, %s146
      %p155 = scmp.eq.s32.totalorder %s20, 7
      %p156 = por %p154, %p155
      %p157 = scmp.ne.s32.totalorder %s146, %s147
      %p158 = scmp.eq.s32.totalorder %s20, 0
      %p159 = por %p157, %p158
      %p160 = scmp.ne.s32.totalorder %s146, %s147
      %p161 = scmp.eq.s32.totalorder %s21, 7
      %p162 = por %p160, %p161
      %p164 = scmp.ne.s32.totalorder %s147, %s163
      %p165 = scmp.eq.s32.totalorder %s21, 0
      %p166 = por %p164, %p165
      %s167 = ssub.s32 %s22, %s34
      %s168 = ssub.s32 %s23, %s30
      %s169 = sor.u32 %s167, %s168
      %p170 = scmp.eq.s32.totalorder %s169, 0
      %s172 = sadd.s32 %s171, 1
      %s173 = scalar_select %p170, %s171, %s172
      %p176 = pneg %p170
      %p177 = scmp.eq.s32.totalorder %s15, 7
      %p178 = por %p176, %p177
      %p179 = scmp.ne.s32.totalorder %s171, %s174
      %p180 = scmp.eq.s32.totalorder %s15, 0
      %p181 = por %p179, %p180
      %p182 = scmp.ne.s32.totalorder %s171, %s174
      %p183 = scmp.eq.s32.totalorder %s20, 7
      %p184 = por %p182, %p183
      %p185 = scmp.ne.s32.totalorder %s174, %s175
      %p186 = scmp.eq.s32.totalorder %s20, 0
      %p187 = por %p185, %p186
      %p188 = scmp.ne.s32.totalorder %s174, %s175
      %p189 = scmp.eq.s32.totalorder %s21, 7
      %p190 = por %p188, %p189
      %p192 = scmp.ne.s32.totalorder %s175, %s191
      %p193 = scmp.eq.s32.totalorder %s21, 0
      %p194 = por %p192, %p193
      %s195 = ssub.s32 %s22, %s34
      %s196 = ssub.s32 %s23, %s30
      %s197 = sor.u32 %s195, %s196
      %p198 = scmp.eq.s32.totalorder %s197, 0
      %s200 = sadd.s32 %s199, 1
      %s201 = scalar_select %p198, %s199, %s200
      %p204 = pneg %p198
      %p205 = scmp.eq.s32.totalorder %s15, 7
      %p206 = por %p204, %p205
      %p207 = scmp.ne.s32.totalorder %s199, %s202
      %p208 = scmp.eq.s32.totalorder %s15, 0
      %p209 = por %p207, %p208
      %p210 = scmp.ne.s32.totalorder %s199, %s202
      %p211 = scmp.eq.s32.totalorder %s20, 7
      %p212 = por %p210, %p211
      %p213 = scmp.ne.s32.totalorder %s202, %s203
      %p214 = scmp.eq.s32.totalorder %s20, 0
      %p215 = por %p213, %p214
      %p216 = scmp.ne.s32.totalorder %s202, %s203
      %p217 = scmp.eq.s32.totalorder %s21, 7
      %p218 = por %p216, %p217
      %p220 = scmp.ne.s32.totalorder %s203, %s219
      %p221 = scmp.eq.s32.totalorder %s21, 0
      %p222 = por %p220, %p221
      %p223 = scmp.le.s32.totalorder 1, %s15
      %p224 = scmp.lt.s32.totalorder %s15, 9
      %p225 = pnand %p223, %p224
      %p226 = pneg %p225
      // Predicated region
      $region9: #{masked_mha_forward.4} parent=5 // pred_check
        _
      $region10: #{masked_mha_forward.4} parent=5 // pred_check_branch
        %228 = sbr.rel (%p225) target = $region12
      $region11: #{masked_mha_forward.4} parent=5 // pred_region
        %s229 = ssub.s32 %s15, 1
      $region12: #{masked_mha_forward.4} parent=5 // pred_fallthru
        _
      %p230 = scmp.lt.s32.totalorder %s15, 8
      // Predicated region
      $region13: #{masked_mha_forward.4} parent=5 // pred_check
        %p231 = pneg %p230
      $region14: #{masked_mha_forward.4} parent=5 // pred_check_branch
        %233 = sbr.rel (%p231) target = $region16
      $region15: #{masked_mha_forward.4} parent=5 // pred_region
        // Predicated region
        $region17: #{masked_mha_forward.4} parent=15 // pred_check
          %p234 = pneg %p49
        $region18: #{masked_mha_forward.4} parent=15 // pred_check_branch
          %236 = sbr.rel (%p234) target = $region20
        $region19: #{masked_mha_forward.4} parent=15 // pred_region
          %p237 = scmp.lt.s32.totalorder %s22, 7
          %s238 = scalar_select %p237, %s22, 7
          %p239 = scmp.lt.s32.totalorder %s23, 0
          %s240 = scalar_select %p239, %s23, 0
          %s241 = sadd.s32 %s240, %s238
          %s242 = smul.addr %s241, 8
          %s243 = scalar_lea.vmem %s0, %s242
        $region20: #{masked_mha_forward.4} parent=15 // pred_fallthru
          _
        // Predicated region
        $region21: #{masked_mha_forward.4} parent=15 // pred_check
          %p244 = pneg %p75
        $region22: #{masked_mha_forward.4} parent=15 // pred_check_branch
          %246 = sbr.rel (%p244) target = $region24
        $region23: #{masked_mha_forward.4} parent=15 // pred_region
          %p247 = scmp.lt.s32.totalorder %s22, 7
          %s248 = scalar_select %p247, %s22, 7
          %s249 = smul.addr %s248, 8
          %s250 = scalar_lea.vmem %s1, %s249
        $region24: #{masked_mha_forward.4} parent=15 // pred_fallthru
          _
        // Predicated region
        $region25: #{masked_mha_forward.4} parent=15 // pred_check
          %p251 = pneg %p101
        $region26: #{masked_mha_forward.4} parent=15 // pred_check_branch
          %253 = sbr.rel (%p251) target = $region28
        $region27: #{masked_mha_forward.4} parent=15 // pred_region
          %p254 = scmp.lt.s32.totalorder %s22, 7
          %s255 = scalar_select %p254, %s22, 7
          %s256 = smul.addr %s255, 8
          %s257 = scalar_lea.vmem %s2, %s256
        $region28: #{masked_mha_forward.4} parent=15 // pred_fallthru
          _
        // Predicated region
        $region29: #{masked_mha_forward.4} parent=15 // pred_check
          %p258 = pneg %p153
        $region30: #{masked_mha_forward.4} parent=15 // pred_check_branch
          %260 = sbr.rel (%p258) target = $region32
        $region31: #{masked_mha_forward.4} parent=15 // pred_region
          %p261 = scmp.lt.s32.totalorder %s22, 0
          %s262 = ssub.s32 0, %s22
          %s263 = scalar_select %p261, %s262, %s22
          %s264 = sand.u32 %s263, 1
          %s265 = ssub.s32 0, %s264
          %s266 = scalar_select %p261, %s265, %s264
          %p267 = scmp.ne.s32.totalorder %s266, 0
          %p268 = scmp.lt.s32.totalorder %s266, 0
          %p269 = pnand %p268, %p267
          %p270 = pneg %p269
          %s271 = sadd.s32 %s266, 2
          %s272 = scalar_select %p270, %s271, %s266
          %p273 = scmp.lt.s32.totalorder %s272, 1
          %s274 = scalar_select %p273, %s272, 1
          %p275 = scmp.lt.s32.totalorder %s23, 0
          %s276 = scalar_select %p275, %s23, 0
          %s277 = sadd.s32 %s276, %s274
          %s278 = smul.addr %s277, 2
          %s279 = scalar_lea.vmem %s3, %s278
          %p280 = scmp.lt.s32.totalorder %s22, 0
          %s281 = ssub.s32 0, %s22
          %s282 = scalar_select %p280, %s281, %s22
          %s283 = sand.u32 %s282, 1
          %s284 = ssub.s32 0, %s283
          %s285 = scalar_select %p280, %s284, %s283
          %p286 = scmp.ne.s32.totalorder %s285, 0
          %p287 = scmp.lt.s32.totalorder %s285, 0
          %p288 = pnand %p287, %p286
          %p289 = pneg %p288
          %s290 = sadd.s32 %s285, 2
          %s291 = scalar_select %p289, %s290, %s285
        $region32: #{masked_mha_forward.4} parent=15 // pred_fallthru
          _
      $region16: #{masked_mha_forward.4} parent=5 // pred_fallthru
        _
      %p292 = scmp.le.s32.totalorder 1, %s15
      %p293 = scmp.lt.s32.totalorder %s15, 9
      %p294 = pnand %p292, %p293
      %p295 = pneg %p294
      // Predicated region
      $region33: #{masked_mha_forward.4} parent=5 // pred_check
        _
      $region34: #{masked_mha_forward.4} parent=5 // pred_check_branch
        %297 = sbr.rel (%p294) target = $region36
      $region35: #{masked_mha_forward.4} parent=5 // pred_region
        %s298 = ssub.s32 %s15, 1
        %p299 = scmp.lt.s32.totalorder %s24, 7
        %s300 = scalar_select %p299, %s24, 7
        %p301 = scmp.lt.s32.totalorder %s25, 0
        %s302 = scalar_select %p301, %s25, 0
        %s303 = sadd.s32 %s302, %s300
        %s304 = smul.addr %s303, 8
        %s305 = scalar_lea.vmem %s0, %s304
        %p306 = pneg %p55
        %p307 = pneg %p52
        %p308 = scmp.lt.s32.totalorder %s24, 7
        %s309 = scalar_select %p308, %s24, 7
        %s310 = smul.addr %s309, 8
        %s311 = scalar_lea.vmem %s1, %s310
        %p312 = pneg %p81
        %p313 = pneg %p78
        %p314 = scmp.lt.s32.totalorder %s24, 7
        %s315 = scalar_select %p314, %s24, 7
        %s316 = smul.addr %s315, 8
        %s317 = scalar_lea.vmem %s2, %s316
        %p318 = pneg %p107
        %p319 = pneg %p104
        %p320 = scmp.lt.s32.totalorder %s24, 0
        %s321 = ssub.s32 0, %s24
        %s322 = scalar_select %p320, %s321, %s24
        %s323 = sand.u32 %s322, 1
        %s324 = ssub.s32 0, %s323
        %s325 = scalar_select %p320, %s324, %s323
        %p326 = scmp.ne.s32.totalorder %s325, 0
        %p327 = scmp.lt.s32.totalorder %s325, 0
        %p328 = pnand %p327, %p326
        %p329 = pneg %p328
        %s330 = sadd.s32 %s325, 2
        %s331 = scalar_select %p329, %s330, %s325
        %p332 = scmp.lt.s32.totalorder %s331, 1
        %s333 = scalar_select %p332, %s331, 1
        %p334 = scmp.lt.s32.totalorder %s25, 0
        %s335 = scalar_select %p334, %s25, 0
        %s336 = sadd.s32 %s335, %s333
        %s337 = smul.addr %s336, 2
        %s338 = scalar_lea.vmem %s3, %s337
        %p339 = pneg %p159
        %p340 = pneg %p156
        %p341 = pneg %p187
        %p342 = pneg %p184
        %p343 = scmp.lt.s32.totalorder %s24, 7
        %s344 = scalar_select %p343, %s24, 7
        %p345 = scmp.lt.s32.totalorder %s25, 0
        %s346 = scalar_select %p345, %s25, 0
        %s347 = sadd.s32 %s346, %s344
        %s348 = smul.addr %s347, 8
        %s349 = scalar_lea.vmem %s4, %s348
        %p350 = pneg %p215
        %p351 = pneg %p212
        %s352 = sand.u32 %s202, 1
        %s353 = scalar_lea.sflag [#allocation3], %s352
        %s354 = sand.u32 %s202, 1
        %s355 = smul.addr %s354, 8
        %s356 = scalar_lea.vmem [#allocation2], %s355
        %p357 = scmp.lt.s32.totalorder %s24, 7
        %s358 = scalar_select %p357, %s24, 7
        %p359 = scmp.lt.s32.totalorder %s25, 0
        %s360 = scalar_select %p359, %s25, 0
        %s361 = sadd.s32 %s360, %s358
        %s362 = smul.addr %s361, 8
        %s363 = scalar_lea.vmem %s0, %s362
        %p364 = scmp.lt.s32.totalorder %s24, 7
        %s365 = scalar_select %p364, %s24, 7
        %s366 = smul.addr %s365, 8
        %s367 = scalar_lea.vmem %s1, %s366
        %p368 = scmp.lt.s32.totalorder %s24, 7
        %s369 = scalar_select %p368, %s24, 7
        %s370 = smul.addr %s369, 8
        %s371 = scalar_lea.vmem %s2, %s370
        %p372 = scmp.lt.s32.totalorder %s24, 0
        %s373 = ssub.s32 0, %s24
        %s374 = scalar_select %p372, %s373, %s24
        %s375 = sand.u32 %s374, 1
        %s376 = ssub.s32 0, %s375
        %s377 = scalar_select %p372, %s376, %s375
        %p378 = scmp.ne.s32.totalorder %s377, 0
        %p379 = scmp.lt.s32.totalorder %s377, 0
        %p380 = pnand %p379, %p378
        %p381 = pneg %p380
        %s382 = sadd.s32 %s377, 2
        %s383 = scalar_select %p381, %s382, %s377
        %p384 = scmp.lt.s32.totalorder %s383, 1
        %s385 = scalar_select %p384, %s383, 1
        %p386 = scmp.lt.s32.totalorder %s25, 0
        %s387 = scalar_select %p386, %s25, 0
        %s388 = sadd.s32 %s387, %s385
        %s389 = smul.addr %s388, 2
        %s390 = scalar_lea.vmem %s3, %s389
        %p391 = scmp.lt.s32.totalorder %s24, 0
        %s392 = ssub.s32 0, %s24
        %s393 = scalar_select %p391, %s392, %s24
        %s394 = sand.u32 %s393, 1
        %s395 = ssub.s32 0, %s394
        %s396 = scalar_select %p391, %s395, %s394
        %p397 = scmp.ne.s32.totalorder %s396, 0
        %p398 = scmp.lt.s32.totalorder %s396, 0
        %p399 = pnand %p398, %p397
        %p400 = pneg %p399
        %s401 = sadd.s32 %s396, 2
        %s402 = scalar_select %p400, %s401, %s396
        %p403 = scmp.lt.s32.totalorder %s24, 7
        %s404 = scalar_select %p403, %s24, 7
        %p405 = scmp.lt.s32.totalorder %s25, 0
        %s406 = scalar_select %p405, %s25, 0
        %s407 = sadd.s32 %s406, %s404
        %s408 = smul.addr %s407, 8
        %s409 = scalar_lea.vmem %s4, %s408
        %v412 = vld [vmem:[%s363] sm:$0xff]
        %v413 = vld [vmem:[%s367] sm:$0xff]
        %v414 = vld [vmem:[%s371] sm:$0xff]
        %vm415 = vcmask 64512
        %v417 = vsel %vm415, %v412, 0
        %v420 = vsel %vm415, %v413, 0
        %422 = vmatprep.subr.mxu0 0.0
        %423 = vmatpush1.xpose.msra.mxu0 %v420
        %424 = vmatprep.subr.mxu0 0.0
        %425 = vmatpush1.xpose.msra.mxu0 0.0
        %426 = vmatprep.subr.mxu0 0.0
        %427 = vmatpush1.xpose.msra.mxu0 0.0
        %428 = vmatprep.subr.mxu0 0.0
        %429 = vmatpush1.xpose.msra.mxu0 0.0
        %430 = vmatprep.subr.mxu0 0.0
        %431 = vmatpush1.xpose.msra.mxu0 0.0
        %432 = vmatprep.subr.mxu0 0.0
        %433 = vmatpush1.xpose.msra.mxu0 0.0
        %434 = vmatprep.subr.mxu0 0.0
        %435 = vmatpush1.xpose.msra.mxu0 0.0
        %436 = vmatprep.subr.mxu0 0.0
        %437 = vmatpush1.xpose.msra.mxu0 0.0
        %438 = vmatprep.subr.mxu0 0.0
        %439 = vmatpush1.xpose.msra.mxu0 0.0
        %440 = vmatprep.subr.mxu0 0.0
        %441 = vmatpush1.xpose.msra.mxu0 0.0
        %442 = vmatprep.subr.mxu0 0.0
        %443 = vmatpush1.xpose.msra.mxu0 0.0
        %444 = vmatprep.subr.mxu0 0.0
        %445 = vmatpush1.xpose.msra.mxu0 0.0
        %446 = vmatprep.subr.mxu0 0.0
        %447 = vmatpush1.xpose.msra.mxu0 0.0
        %448 = vmatprep.subr.mxu0 0.0
        %449 = vmatpush1.xpose.msra.mxu0 0.0
        %450 = vmatprep.subr.mxu0 0.0
        %451 = vmatpush1.xpose.msra.mxu0 0.0
        %452 = vmatprep.subr.mxu0 0.0
        %453 = vmatpush1.xpose.msra.mxu0 0.0
        %454 = vmatprep.subr.mxu0 0.0
        %455 = vmatpush1.xpose.msra.mxu0 0.0
        %456 = vmatprep.subr.mxu0 0.0
        %457 = vmatpush1.xpose.msra.mxu0 0.0
        %458 = vmatprep.subr.mxu0 0.0
        %459 = vmatpush1.xpose.msra.mxu0 0.0
        %460 = vmatprep.subr.mxu0 0.0
        %461 = vmatpush1.xpose.msra.mxu0 0.0
        %462 = vmatprep.subr.mxu0 0.0
        %463 = vmatpush1.xpose.msra.mxu0 0.0
        %464 = vmatprep.subr.mxu0 0.0
        %465 = vmatpush1.xpose.msra.mxu0 0.0
        %466 = vmatprep.subr.mxu0 0.0
        %467 = vmatpush1.xpose.msra.mxu0 0.0
        %468 = vmatprep.subr.mxu0 0.0
        %469 = vmatpush1.xpose.msra.mxu0 0.0
        %470 = vmatprep.subr.mxu0 0.0
        %471 = vmatpush1.xpose.msra.mxu0 0.0
        %472 = vmatprep.subr.mxu0 0.0
        %473 = vmatpush1.xpose.msra.mxu0 0.0
        %474 = vmatprep.subr.mxu0 0.0
        %475 = vmatpush1.xpose.msra.mxu0 0.0
        %476 = vmatprep.subr.mxu0 0.0
        %477 = vmatpush1.xpose.msra.mxu0 0.0
        %478 = vmatprep.subr.mxu0 0.0
        %479 = vmatpush1.xpose.msra.mxu0 0.0
        %480 = vmatprep.subr.mxu0 0.0
        %481 = vmatpush1.xpose.msra.mxu0 0.0
        %482 = vmatprep.subr.mxu0 0.0
        %483 = vmatpush1.xpose.msra.mxu0 0.0
        %484 = vmatprep.subr.mxu0 0.0
        %485 = vmatpush1.xpose.msra.mxu0 0.0
        %486 = vmatprep.mubr.f32.mxu0 0.0
        %487 = vmatmul.mubr.f32.gmra.mrb[0].mxu0 %v417
        %v488 = vpop.f32.mrb[0].mxu0
        %v489 = vadd.f32 0.0, %v488
        %v490 = vpop.f32.mrb[0].mxu0
        %491 = vdwg.mxu0
        %v492 = vld [vmem:[%s390] sm:$0x3]
        %vm493 = vnez %v492
        %v494 = vsel %vm493, 16843009, 0
        %v495 = vunpack.c.0.s8 %v494
        %vm496 = vcmp.ne.s32.totalorder %v495, 0
        %v497 = vsel %vm496, %v489, -inf
        %v498 = vsel %vm415, %v497, -inf
        %499 = vmax.xlane.f32.xlu0 %v498
        %v500 = vpop.xlane.xlu0 %499
        %v501 = vsub.f32 %v497, %v500
        %v502 = vmul.f32 %v501, 1.442695
        %v503 = vpow.pop %v502
        %v504 = vsel %vm415, %v503, 0.0
        %505 = vadd.xlane.f32.xlu0 %v504
        %v506 = vpop.xlane.xlu0 %505
        %v507 = vrcp.pop %v506
        %v508 = vmul.f32 %v503, %v507
        %509 = vst.msk [vmem:[%s356] sm:$0xff] %vm415, %v508
        %v511 = vsel %vm415, %v508, 0
        %513 = vmatprep.subr.mxu0 0.0
        %514 = vmatpush1.msra.mxu0 %v414
        %515 = vmatprep.subr.mxu0 0.0
        %516 = vmatpush1.msra.mxu0 0.0
        %517 = vmatprep.subr.mxu0 0.0
        %518 = vmatpush1.msra.mxu0 0.0
        %519 = vmatprep.subr.mxu0 0.0
        %520 = vmatpush1.msra.mxu0 0.0
        %521 = vmatprep.subr.mxu0 0.0
        %522 = vmatpush1.msra.mxu0 0.0
        %523 = vmatprep.subr.mxu0 0.0
        %524 = vmatpush1.msra.mxu0 0.0
        %525 = vmatprep.subr.mxu0 0.0
        %526 = vmatpush1.msra.mxu0 0.0
        %527 = vmatprep.subr.mxu0 0.0
        %528 = vmatpush1.msra.mxu0 0.0
        %529 = vmatprep.subr.mxu0 0.0
        %530 = vmatpush1.msra.mxu0 0.0
        %531 = vmatprep.subr.mxu0 0.0
        %532 = vmatpush1.msra.mxu0 0.0
        %533 = vmatprep.subr.mxu0 0.0
        %534 = vmatpush1.msra.mxu0 0.0
        %535 = vmatprep.subr.mxu0 0.0
        %536 = vmatpush1.msra.mxu0 0.0
        %537 = vmatprep.subr.mxu0 0.0
        %538 = vmatpush1.msra.mxu0 0.0
        %539 = vmatprep.subr.mxu0 0.0
        %540 = vmatpush1.msra.mxu0 0.0
        %541 = vmatprep.subr.mxu0 0.0
        %542 = vmatpush1.msra.mxu0 0.0
        %543 = vmatprep.subr.mxu0 0.0
        %544 = vmatpush1.msra.mxu0 0.0
        %545 = vmatprep.subr.mxu0 0.0
        %546 = vmatpush1.msra.mxu0 0.0
        %547 = vmatprep.subr.mxu0 0.0
        %548 = vmatpush1.msra.mxu0 0.0
        %549 = vmatprep.subr.mxu0 0.0
        %550 = vmatpush1.msra.mxu0 0.0
        %551 = vmatprep.subr.mxu0 0.0
        %552 = vmatpush1.msra.mxu0 0.0
        %553 = vmatprep.subr.mxu0 0.0
        %554 = vmatpush1.msra.mxu0 0.0
        %555 = vmatprep.subr.mxu0 0.0
        %556 = vmatpush1.msra.mxu0 0.0
        %557 = vmatprep.subr.mxu0 0.0
        %558 = vmatpush1.msra.mxu0 0.0
        %559 = vmatprep.subr.mxu0 0.0
        %560 = vmatpush1.msra.mxu0 0.0
        %561 = vmatprep.subr.mxu0 0.0
        %562 = vmatpush1.msra.mxu0 0.0
        %563 = vmatprep.subr.mxu0 0.0
        %564 = vmatpush1.msra.mxu0 0.0
        %565 = vmatprep.subr.mxu0 0.0
        %566 = vmatpush1.msra.mxu0 0.0
        %567 = vmatprep.subr.mxu0 0.0
        %568 = vmatpush1.msra.mxu0 0.0
        %569 = vmatprep.subr.mxu0 0.0
        %570 = vmatpush1.msra.mxu0 0.0
        %571 = vmatprep.subr.mxu0 0.0
        %572 = vmatpush1.msra.mxu0 0.0
        %573 = vmatprep.subr.mxu0 0.0
        %574 = vmatpush1.msra.mxu0 0.0
        %575 = vmatprep.subr.mxu0 0.0
        %576 = vmatpush1.msra.mxu0 0.0
        %577 = vmatprep.mubr.f32.mxu0 0.0
        %578 = vmatmul.mubr.f32.gmra.mrb[0].mxu0 %v511
        %v579 = vpop.f32.mrb[0].mxu0
        %v580 = vadd.f32 0.0, %v579
        %v581 = vpop.f32.mrb[0].mxu0
        %582 = vdwg.mxu0
        %583 = vst.msk [vmem:[%s409] sm:$0xff] %vm415, %v580
        %p584 = scmp.lt.s32.totalorder %s24, 7
        %s585 = scalar_select %p584, %s24, 7
        %p586 = scmp.lt.s32.totalorder %s25, 0
        %s587 = scalar_select %p586, %s25, 0
        %s588 = sadd.s32 %s587, %s585
        %s589 = smul.addr %s588, 8
        %s590 = scalar_lea.vmem %s4, %s589
        %s591 = sand.u32 %s202, 1
        %s592 = scalar_lea.sflag [#allocation3], %s591
        %s593 = sand.u32 %s202, 1
        %s594 = smul.addr %s593, 8
        %s595 = scalar_lea.vmem [#allocation2], %s594
        // Predicated region
        $region37: #{masked_mha_forward.4} parent=35 // pred_check
          %p596 = pneg %p184
        $region38: #{masked_mha_forward.4} parent=35 // pred_check_branch
          %598 = sbr.rel (%p596) target = $region40
        $region39: #{masked_mha_forward.4} parent=35 // pred_region
          _
        $region40: #{masked_mha_forward.4} parent=35 // pred_fallthru
          _
        // Predicated region
        $region41: #{masked_mha_forward.4} parent=35 // pred_check
          %p599 = pneg %p212
        $region42: #{masked_mha_forward.4} parent=35 // pred_check_branch
          %601 = sbr.rel (%p599) target = $region44
        $region43: #{masked_mha_forward.4} parent=35 // pred_region
          %s603 = ssub.s32 128, 128
          %604 = vsyncadd %s592, %s603
          %s605 = sadd.s32 %s25, %s24
          %s606 = smul.addr %s605, 128
          %s607 = scalar_lea.hbm %s5, %s606
          %s609 = sshll.u32 %s595, 4
          %s610 = int_to_ptr.vmem [resolvable:$true] %s609
          %612 = dma.vmem_to_hbm [thread:$0]  %s610, 128, %s607, %s592
        $region44: #{masked_mha_forward.4} parent=35 // pred_fallthru
          _
      $region36: #{masked_mha_forward.4} parent=5 // pred_fallthru
        _
      %p613 = scmp.le.s32.totalorder 2, %s15
      // Predicated region
      $region45: #{masked_mha_forward.4} parent=5 // pred_check
        %p614 = pneg %p613
      $region46: #{masked_mha_forward.4} parent=5 // pred_check_branch
        %616 = sbr.rel (%p614) target = $region48
      $region47: #{masked_mha_forward.4} parent=5 // pred_region
        %s617 = ssub.s32 %s15, 2
        // Predicated region
        $region49: #{masked_mha_forward.4} parent=47 // pred_check
          %p618 = pneg %p190
        $region50: #{masked_mha_forward.4} parent=47 // pred_check_branch
          %620 = sbr.rel (%p618) target = $region52
        $region51: #{masked_mha_forward.4} parent=47 // pred_region
          %p621 = scmp.lt.s32.totalorder %s26, 7
          %s622 = scalar_select %p621, %s26, 7
          %p623 = scmp.lt.s32.totalorder %s27, 0
          %s624 = scalar_select %p623, %s27, 0
          %s625 = sadd.s32 %s624, %s622
          %s626 = smul.addr %s625, 8
          %s627 = scalar_lea.vmem %s4, %s626
        $region52: #{masked_mha_forward.4} parent=47 // pred_fallthru
          _
        // Predicated region
        $region53: #{masked_mha_forward.4} parent=47 // pred_check
          %p628 = pneg %p218
        $region54: #{masked_mha_forward.4} parent=47 // pred_check_branch
          %630 = sbr.rel (%p628) target = $region56
        $region55: #{masked_mha_forward.4} parent=47 // pred_region
          %s631 = sand.u32 %s203, 1
          %s632 = scalar_lea.sflag [#allocation3], %s631
          %s633 = sand.u32 %s203, 1
          %s634 = smul.addr %s633, 8
          %s635 = scalar_lea.vmem [#allocation2], %s634
          %636 = dma.done %s632, 128
        $region56: #{masked_mha_forward.4} parent=47 // pred_fallthru
          _
      $region48: #{masked_mha_forward.4} parent=5 // pred_fallthru
        _
    $region6: #{masked_mha_forward.4} parent=1 // loop_footer
      %s19 = sadd.s32 1, %s15
    $region7: #{masked_mha_forward.4} parent=1 // loop_footer_branch
      %14 = sbr.rel target = $region3
    $region8: #{masked_mha_forward.4} parent=1 // loop_exit
      _
    %637 = vsyncpa [#allocation3], 1
    %s638 = scalar_lea.sflag [#allocation3], 1
    %639 = vsyncpa %s638, 1

// kernel: masked_mha_forward.5
$region0: #{masked_mha_forward.5}
  #allocation0 [shape = 'u32[]', space=smem, size = 0x4, offset = 0x4, fixed_abs, tag = 'smem constant byte address 0x4 - core index']
  #allocation1 [shape = 'u32[144,128]{1,0:T(1,128)}', space=vmem, size = 0x12000, scoped, tag = 'internal scratch']
  %s0 = inlined_call_operand.vmem [shape: f32[2,4,8,8], index: 0, kind: input, shape index: {}]
  %s1 = inlined_call_operand.vmem [shape: f32[32,32], index: 1, kind: input, shape index: {}]
  %s2 = inlined_call_operand.vmem [shape: f32[1,32], index: 2, kind: input, shape index: {}]
  %s3 = inlined_call_operand.hbm [shape: f32[2,8,32], index: 3, kind: output, shape index: {}]
  %s4 = sld [smem:[#allocation0]]
  $region45: #{masked_mha_forward.5} parent=0
    _
  %s6 = ssub.s32 1, %s4
  %s7 = scalar_select 0, %s6, %s4
  $region1: #{masked_mha_forward.5} parent=0
    #allocation2 [shape = 'u8[8192]{0}', space=vmem, size = 0x2000, scoped, tag = 'output window, operand 0']
    #allocation3 [shape = 's32[2]{0}', space=sflag, size = 0x8, scoped, tag = 'scoped memory for masked_mha_forward.5']
    %8 = vsyncpa [#allocation3], 0
    %s9 = scalar_lea.sflag [#allocation3], 1
    %10 = vsyncpa %s9, 0
    loop: start=0, step=1, limit=4
    $region2: #{masked_mha_forward.5} parent=1 // loop_pre_header
      _
    $region3: #{masked_mha_forward.5} parent=1 // loop_header
      %s12 = sphi 0, %s16
      %p13 = scmp.ge.s32.totalorder %s12, 4
      %s19 = sphi 0, %s31
      %s20 = sphi 0, %s27
      %s21 = sphi 0, %s19
      %s22 = sphi 0, %s20
      %s23 = sphi 0, %s21
      %s24 = sphi 0, %s22
      %s36 = sphi 0, %s38
      %s39 = sphi 0, %s36
      %s40 = sphi 0, %s39
      %s56 = sphi 0, %s40
      %s60 = sphi 0, %s60
      %s62 = sphi 0, %s60
      %s63 = sphi 0, %s62
      %s77 = sphi 0, %s63
      %s81 = sphi 0, %s81
      %s83 = sphi 0, %s81
      %s84 = sphi 0, %s83
      %s98 = sphi 0, %s84
      %s106 = sphi 0, %s108
      %s109 = sphi 0, %s106
      %s110 = sphi 0, %s109
      %s126 = sphi 0, %s110
    $region4: #{masked_mha_forward.5} parent=1 // loop_header_branch
      %15 = sbr.rel (%p13) target = $region8
    $region5: #{masked_mha_forward.5} parent=1 // loop_body
      %s17 = ssub.s32 %s12, 1
      %s18 = ssub.s32 %s12, 2
      %s25 = sadd.s32 1, %s20
      %p26 = scmp.ge.s32.totalorder %s25, 1
      %s27 = scalar_select %p26, 0, %s25
      %s28 = sadd.s32 1, %s19
      %s29 = scalar_select %p26, %s28, %s19
      %p30 = scmp.ge.s32.totalorder %s29, 2
      %s31 = scalar_select %p30, 0, %s29
      %s32 = ssub.s32 %s19, %s31
      %s33 = ssub.s32 %s20, %s27
      %s34 = sor.u32 %s32, %s33
      %p35 = scmp.eq.s32.totalorder %s34, 0
      %s37 = sadd.s32 %s36, 1
      %s38 = scalar_select %p35, %s36, %s37
      %p41 = pneg %p35
      %p42 = scmp.eq.s32.totalorder %s12, 1
      %p43 = por %p41, %p42
      %p44 = scmp.ne.s32.totalorder %s36, %s39
      %p45 = scmp.eq.s32.totalorder %s12, 0
      %p46 = por %p44, %p45
      %p47 = scmp.ne.s32.totalorder %s36, %s39
      %p48 = scmp.eq.s32.totalorder %s17, 1
      %p49 = por %p47, %p48
      %p50 = scmp.ne.s32.totalorder %s39, %s40
      %p51 = scmp.eq.s32.totalorder %s17, 0
      %p52 = por %p50, %p51
      %p53 = scmp.ne.s32.totalorder %s39, %s40
      %p54 = scmp.eq.s32.totalorder %s18, 1
      %p55 = por %p53, %p54
      %p57 = scmp.ne.s32.totalorder %s40, %s56
      %p58 = scmp.eq.s32.totalorder %s18, 0
      %p59 = por %p57, %p58
      %s61 = sadd.s32 %s60, 1
      %p64 = scmp.eq.s32.totalorder %s12, 1
      %p65 = scmp.ne.s32.totalorder %s60, %s62
      %p66 = scmp.eq.s32.totalorder %s12, 0
      %p67 = por %p65, %p66
      %p68 = scmp.ne.s32.totalorder %s60, %s62
      %p69 = scmp.eq.s32.totalorder %s17, 1
      %p70 = por %p68, %p69
      %p71 = scmp.ne.s32.totalorder %s62, %s63
      %p72 = scmp.eq.s32.totalorder %s17, 0
      %p73 = por %p71, %p72
      %p74 = scmp.ne.s32.totalorder %s62, %s63
      %p75 = scmp.eq.s32.totalorder %s18, 1
      %p76 = por %p74, %p75
      %p78 = scmp.ne.s32.totalorder %s63, %s77
      %p79 = scmp.eq.s32.totalorder %s18, 0
      %p80 = por %p78, %p79
      %s82 = sadd.s32 %s81, 1
      %p85 = scmp.eq.s32.totalorder %s12, 1
      %p86 = scmp.ne.s32.totalorder %s81, %s83
      %p87 = scmp.eq.s32.totalorder %s12, 0
      %p88 = por %p86, %p87
      %p89 = scmp.ne.s32.totalorder %s81, %s83
      %p90 = scmp.eq.s32.totalorder %s17, 1
      %p91 = por %p89, %p90
      %p92 = scmp.ne.s32.totalorder %s83, %s84
      %p93 = scmp.eq.s32.totalorder %s17, 0
      %p94 = por %p92, %p93
      %p95 = scmp.ne.s32.totalorder %s83, %s84
      %p96 = scmp.eq.s32.totalorder %s18, 1
      %p97 = por %p95, %p96
      %p99 = scmp.ne.s32.totalorder %s84, %s98
      %p100 = scmp.eq.s32.totalorder %s18, 0
      %p101 = por %p99, %p100
      %s102 = ssub.s32 %s19, %s31
      %s103 = ssub.s32 %s20, %s27
      %s104 = sor.u32 %s102, %s103
      %p105 = scmp.eq.s32.totalorder %s104, 0
      %s107 = sadd.s32 %s106, 1
      %s108 = scalar_select %p105, %s106, %s107
      %p111 = pneg %p105
      %p112 = scmp.eq.s32.totalorder %s12, 1
      %p113 = por %p111, %p112
      %p114 = scmp.ne.s32.totalorder %s106, %s109
      %p115 = scmp.eq.s32.totalorder %s12, 0
      %p116 = por %p114, %p115
      %p117 = scmp.ne.s32.totalorder %s106, %s109
      %p118 = scmp.eq.s32.totalorder %s17, 1
      %p119 = por %p117, %p118
      %p120 = scmp.ne.s32.totalorder %s109, %s110
      %p121 = scmp.eq.s32.totalorder %s17, 0
      %p122 = por %p120, %p121
      %p123 = scmp.ne.s32.totalorder %s109, %s110
      %p124 = scmp.eq.s32.totalorder %s18, 1
      %p125 = por %p123, %p124
      %p127 = scmp.ne.s32.totalorder %s110, %s126
      %p128 = scmp.eq.s32.totalorder %s18, 0
      %p129 = por %p127, %p128
      %p130 = scmp.le.s32.totalorder 1, %s12
      %p131 = scmp.lt.s32.totalorder %s12, 3
      %p132 = pnand %p130, %p131
      %p133 = pneg %p132
      // Predicated region
      $region9: #{masked_mha_forward.5} parent=5 // pred_check
        _
      $region10: #{masked_mha_forward.5} parent=5 // pred_check_branch
        %135 = sbr.rel (%p132) target = $region12
      $region11: #{masked_mha_forward.5} parent=5 // pred_region
        %s136 = ssub.s32 %s12, 1
        // Predicated region
        $region13: #{masked_mha_forward.5} parent=11 // pred_check
          %p137 = pneg %p73
        $region14: #{masked_mha_forward.5} parent=11 // pred_check_branch
          %139 = sbr.rel (%p137) target = $region16
        $region15: #{masked_mha_forward.5} parent=11 // pred_region
          _
        $region16: #{masked_mha_forward.5} parent=11 // pred_fallthru
          _
        // Predicated region
        $region17: #{masked_mha_forward.5} parent=11 // pred_check
          %p140 = pneg %p94
        $region18: #{masked_mha_forward.5} parent=11 // pred_check_branch
          %142 = sbr.rel (%p140) target = $region20
        $region19: #{masked_mha_forward.5} parent=11 // pred_region
          _
        $region20: #{masked_mha_forward.5} parent=11 // pred_fallthru
          _
      $region12: #{masked_mha_forward.5} parent=5 // pred_fallthru
        _
      %p143 = scmp.lt.s32.totalorder %s12, 2
      // Predicated region
      $region21: #{masked_mha_forward.5} parent=5 // pred_check
        %p144 = pneg %p143
      $region22: #{masked_mha_forward.5} parent=5 // pred_check_branch
        %146 = sbr.rel (%p144) target = $region24
      $region23: #{masked_mha_forward.5} parent=5 // pred_region
        // Predicated region
        $region25: #{masked_mha_forward.5} parent=23 // pred_check
          %p147 = pneg %p46
        $region26: #{masked_mha_forward.5} parent=23 // pred_check_branch
          %149 = sbr.rel (%p147) target = $region28
        $region27: #{masked_mha_forward.5} parent=23 // pred_region
          %p150 = scmp.lt.s32.totalorder %s19, 1
          %s151 = scalar_select %p150, %s19, 1
          %p152 = scmp.lt.s32.totalorder %s20, 0
          %s153 = scalar_select %p152, %s20, 0
          %s154 = smul.addr %s151, 4
          %s155 = sadd.s32 %s153, %s154
          %s156 = smul.addr %s155, 8
          %s157 = scalar_lea.vmem %s0, %s156
        $region28: #{masked_mha_forward.5} parent=23 // pred_fallthru
          _
      $region24: #{masked_mha_forward.5} parent=5 // pred_fallthru
        _
      %p158 = scmp.le.s32.totalorder 1, %s12
      %p159 = scmp.lt.s32.totalorder %s12, 3
      %p160 = pnand %p158, %p159
      %p161 = pneg %p160
      // Predicated region
      $region29: #{masked_mha_forward.5} parent=5 // pred_check
        _
      $region30: #{masked_mha_forward.5} parent=5 // pred_check_branch
        %163 = sbr.rel (%p160) target = $region32
      $region31: #{masked_mha_forward.5} parent=5 // pred_region
        %s164 = ssub.s32 %s12, 1
        %p165 = scmp.lt.s32.totalorder %s21, 1
        %s166 = scalar_select %p165, %s21, 1
        %p167 = scmp.lt.s32.totalorder %s22, 0
        %s168 = scalar_select %p167, %s22, 0
        %s169 = smul.addr %s166, 4
        %s170 = sadd.s32 %s168, %s169
        %s171 = smul.addr %s170, 8
        %s172 = scalar_lea.vmem %s0, %s171
        %p173 = pneg %p52
        %p174 = pneg %p49
        %p175 = pneg %p73
        %p176 = pneg %p70
        %p177 = pneg %p94
        %p178 = pneg %p91
        %p179 = pneg %p122
        %p180 = pneg %p119
        %s181 = sand.u32 %s109, 1
        %s182 = scalar_lea.sflag [#allocation3], %s181
        %s183 = sand.u32 %s109, 1
        %s184 = smul.addr %s183, 8
        %s185 = scalar_lea.vmem [#allocation2], %s184
        %p186 = scmp.lt.s32.totalorder %s21, 1
        %s187 = scalar_select %p186, %s21, 1
        %p188 = scmp.lt.s32.totalorder %s22, 0
        %s189 = scalar_select %p188, %s22, 0
        %s190 = smul.addr %s187, 4
        %s191 = sadd.s32 %s189, %s190
        %s192 = smul.addr %s191, 8
        %s193 = scalar_lea.vmem %s0, %s192
        %v194 = vld [vmem:[%s193] sm:$0xff]
        %s195 = scalar_lea.vmem %s193, 8
        %v196 = vld [vmem:[%s195] sm:$0xff]
        %s197 = scalar_lea.vmem %s193, 16
        %v198 = vld [vmem:[%s197] sm:$0xff]
        %s199 = scalar_lea.vmem %s193, 24
        %v200 = vld [vmem:[%s199] sm:$0xff]
        %202 = vrot.lane.b32.xlu0 %v196, 8
        %v203 = vpop.permute.xlu0 %202
        %206 = vrot.lane.b32.xlu0 %v198, 16
        %v207 = vpop.permute.xlu0 %206
        %210 = vrot.lane.b32.xlu0 %v200, 24
        %v211 = vpop.permute.xlu0 %210
        %vm213 = vcmask 64512
        %v214 = vsel %vm213, %v194, %v203
        %vm215 = vcmask 130048
        %v216 = vsel %vm215, %v214, %v207
        %vm217 = vcmask 195584
        %v218 = vsel %vm217, %v216, %v211
        %v219 = vld [vmem:[%s1] sm:$0xff]
        %v220 = vld [vmem:[%s1 + $0x8] sm:$0xff]
        %v221 = vld [vmem:[%s1 + $0x10] sm:$0xff]
        %v222 = vld [vmem:[%s1 + $0x18] sm:$0xff]
        %v223 = vld [vmem:[%s2] sm:$0x1]
        %v225 = vlaneseq
        %v226 = vshrl.u32 %v225, 7
        %v227 = vsub.s32 0, %v226
        %v228 = vrot.slane %v223, %v227
        %vm230 = vcmask 261120
        %v232 = vsel %vm230, %v218, 0
        %234 = vmatprep.subr.mxu0 0.0
        %235 = vmatpush1.msra.mxu0 %v219
        %236 = vmatprep.subr.mxu0 0.0
        %237 = vmatpush1.msra.mxu0 %v220
        %238 = vmatprep.subr.mxu0 0.0
        %239 = vmatpush1.msra.mxu0 %v221
        %240 = vmatprep.subr.mxu0 0.0
        %241 = vmatpush1.msra.mxu0 %v222
        %242 = vmatprep.subr.mxu0 0.0
        %243 = vmatpush1.msra.mxu0 0.0
        %244 = vmatprep.subr.mxu0 0.0
        %245 = vmatpush1.msra.mxu0 0.0
        %246 = vmatprep.subr.mxu0 0.0
        %247 = vmatpush1.msra.mxu0 0.0
        %248 = vmatprep.subr.mxu0 0.0
        %249 = vmatpush1.msra.mxu0 0.0
        %250 = vmatprep.subr.mxu0 0.0
        %251 = vmatpush1.msra.mxu0 0.0
        %252 = vmatprep.subr.mxu0 0.0
        %253 = vmatpush1.msra.mxu0 0.0
        %254 = vmatprep.subr.mxu0 0.0
        %255 = vmatpush1.msra.mxu0 0.0
        %256 = vmatprep.subr.mxu0 0.0
        %257 = vmatpush1.msra.mxu0 0.0
        %258 = vmatprep.subr.mxu0 0.0
        %259 = vmatpush1.msra.mxu0 0.0
        %260 = vmatprep.subr.mxu0 0.0
        %261 = vmatpush1.msra.mxu0 0.0
        %262 = vmatprep.subr.mxu0 0.0
        %263 = vmatpush1.msra.mxu0 0.0
        %264 = vmatprep.subr.mxu0 0.0
        %265 = vmatpush1.msra.mxu0 0.0
        %266 = vmatprep.subr.mxu0 0.0
        %267 = vmatpush1.msra.mxu0 0.0
        %268 = vmatprep.subr.mxu0 0.0
        %269 = vmatpush1.msra.mxu0 0.0
        %270 = vmatprep.subr.mxu0 0.0
        %271 = vmatpush1.msra.mxu0 0.0
        %272 = vmatprep.subr.mxu0 0.0
        %273 = vmatpush1.msra.mxu0 0.0
        %274 = vmatprep.subr.mxu0 0.0
        %275 = vmatpush1.msra.mxu0 0.0
        %276 = vmatprep.subr.mxu0 0.0
        %277 = vmatpush1.msra.mxu0 0.0
        %278 = vmatprep.subr.mxu0 0.0
        %279 = vmatpush1.msra.mxu0 0.0
        %280 = vmatprep.subr.mxu0 0.0
        %281 = vmatpush1.msra.mxu0 0.0
        %282 = vmatprep.subr.mxu0 0.0
        %283 = vmatpush1.msra.mxu0 0.0
        %284 = vmatprep.subr.mxu0 0.0
        %285 = vmatpush1.msra.mxu0 0.0
        %286 = vmatprep.subr.mxu0 0.0
        %287 = vmatpush1.msra.mxu0 0.0
        %288 = vmatprep.subr.mxu0 0.0
        %289 = vmatpush1.msra.mxu0 0.0
        %290 = vmatprep.subr.mxu0 0.0
        %291 = vmatpush1.msra.mxu0 0.0
        %292 = vmatprep.subr.mxu0 0.0
        %293 = vmatpush1.msra.mxu0 0.0
        %294 = vmatprep.subr.mxu0 0.0
        %295 = vmatpush1.msra.mxu0 0.0
        %296 = vmatprep.subr.mxu0 0.0
        %297 = vmatpush1.msra.mxu0 0.0
        %298 = vmatprep.mubr.f32.mxu0 0.0
        %299 = vmatmul.mubr.f32.gmra.mrb[0].mxu0 %v232
        %v300 = vpop.f32.mrb[0].mxu0
        %v301 = vadd.f32 %v228, %v300
        %v302 = vpop.f32.mrb[0].mxu0
        %303 = vdwg.mxu0
        %304 = vst.msk [vmem:[%s185] sm:$0xff] %vm230, %v301
        %s305 = sand.u32 %s109, 1
        %s306 = scalar_lea.sflag [#allocation3], %s305
        %s307 = sand.u32 %s109, 1
        %s308 = smul.addr %s307, 8
        %s309 = scalar_lea.vmem [#allocation2], %s308
        // Predicated region
        $region33: #{masked_mha_forward.5} parent=31 // pred_check
          %p310 = pneg %p119
        $region34: #{masked_mha_forward.5} parent=31 // pred_check_branch
          %312 = sbr.rel (%p310) target = $region36
        $region35: #{masked_mha_forward.5} parent=31 // pred_region
          %s314 = ssub.s32 128, 128
          %315 = vsyncadd %s306, %s314
          %s316 = sadd.s32 %s22, %s21
          %s317 = smul.addr %s316, 128
          %s318 = scalar_lea.hbm %s3, %s317
          %s320 = sshll.u32 %s309, 4
          %s321 = int_to_ptr.vmem [resolvable:$true] %s320
          %323 = dma.vmem_to_hbm [thread:$0]  %s321, 128, %s318, %s306
        $region36: #{masked_mha_forward.5} parent=31 // pred_fallthru
          _
      $region32: #{masked_mha_forward.5} parent=5 // pred_fallthru
        _
      %p324 = scmp.le.s32.totalorder 2, %s12
      // Predicated region
      $region37: #{masked_mha_forward.5} parent=5 // pred_check
        %p325 = pneg %p324
      $region38: #{masked_mha_forward.5} parent=5 // pred_check_branch
        %327 = sbr.rel (%p325) target = $region40
      $region39: #{masked_mha_forward.5} parent=5 // pred_region
        %s328 = ssub.s32 %s12, 2
        // Predicated region
        $region41: #{masked_mha_forward.5} parent=39 // pred_check
          %p329 = pneg %p125
        $region42: #{masked_mha_forward.5} parent=39 // pred_check_branch
          %331 = sbr.rel (%p329) target = $region44
        $region43: #{masked_mha_forward.5} parent=39 // pred_region
          %s332 = sand.u32 %s110, 1
          %s333 = scalar_lea.sflag [#allocation3], %s332
          %s334 = sand.u32 %s110, 1
          %s335 = smul.addr %s334, 8
          %s336 = scalar_lea.vmem [#allocation2], %s335
          %337 = dma.done %s333, 128
        $region44: #{masked_mha_forward.5} parent=39 // pred_fallthru
          _
      $region40: #{masked_mha_forward.5} parent=5 // pred_fallthru
        _
    $region6: #{masked_mha_forward.5} parent=1 // loop_footer
      %s16 = sadd.s32 1, %s12
    $region7: #{masked_mha_forward.5} parent=1 // loop_footer_branch
      %11 = sbr.rel target = $region3
    $region8: #{masked_mha_forward.5} parent=1 // loop_exit
      _
    %338 = vsyncpa [#allocation3], 1
    %s339 = scalar_lea.sflag [#allocation3], 1
    %340 = vsyncpa %s339, 1

// kernel: masked_mha_forward.3
$region0: #{masked_mha_forward.3}
  #allocation0 [shape = 'u32[]', space=smem, size = 0x4, offset = 0x4, fixed_abs, tag = 'smem constant byte address 0x4 - core index']
  #allocation1 [shape = 'u32[144,128]{1,0:T(1,128)}', space=vmem, size = 0x12000, scoped, tag = 'internal scratch']
  %s0 = inlined_call_operand.vmem [shape: f32[2,8,32], index: 0, kind: input, shape index: {}]
  %s1 = inlined_call_operand.vmem [shape: f32[2,8,32], index: 1, kind: input, shape index: {}]
  %s2 = inlined_call_operand.vmem [shape: f32[2,8,32], index: 2, kind: input, shape index: {}]
  %s3 = inlined_call_operand.hbm [shape: f32[32,32], index: 3, kind: input, shape index: {}]
  %s4 = inlined_call_operand.hbm [shape: f32[32,32], index: 4, kind: input, shape index: {}]
  %s5 = inlined_call_operand.hbm [shape: f32[32,32], index: 5, kind: input, shape index: {}]
  %s6 = inlined_call_operand.vmem [shape: f32[1,32], index: 6, kind: input, shape index: {}]
  %s7 = inlined_call_operand.vmem [shape: f32[1,32], index: 7, kind: input, shape index: {}]
  %s8 = inlined_call_operand.hbm [shape: f32[1,32], index: 8, kind: input, shape index: {}]
  %s9 = inlined_call_operand.vmem [shape: f32[2,4,8,8], index: 9, kind: output, shape index: {0}]
  %s10 = inlined_call_operand.vmem [shape: f32[2,4,8,8], index: 10, kind: output, shape index: {1}]
  %s11 = inlined_call_operand.vmem [shape: f32[2,4,8,8], index: 11, kind: output, shape index: {2}]
  %12 = xla_tuple %s9, %s10, %s11
  %s13 = sld [smem:[#allocation0]]
  $region101: #{masked_mha_forward.3} parent=0
    _
  %s15 = ssub.s32 1, %s13
  %s16 = scalar_select 0, %s15, %s13
  $region1: #{masked_mha_forward.3} parent=0
    #allocation2 [shape = 'u8[16384]{0}', space=vmem, size = 0x4000, scoped, tag = 'input window, operand 3, single buffered']
    #allocation3 [shape = 's32[2]{0}', space=sflag, size = 0x8, scoped, tag = 'scoped memory for masked_mha_forward.3']
    #allocation4 [shape = 'u8[16384]{0}', space=vmem, size = 0x4000, scoped, tag = 'input window, operand 4, single buffered']
    #allocation5 [shape = 's32[1]{0}', space=sflag, size = 0x4, scoped, tag = 'scoped memory for masked_mha_forward.3']
    #allocation6 [shape = 'u8[16384]{0}', space=vmem, size = 0x4000, scoped, tag = 'input window, operand 5, single buffered']
    #allocation7 [shape = 'u8[512]{0}', space=vmem, size = 0x400, scoped, tag = 'input window, operand 8, single buffered']
    #allocation8 [shape = 's32[1]{0}', space=sflag, size = 0x4, scoped, tag = 'scoped memory for masked_mha_forward.3']
    %17 = vsyncpa [#allocation3], 0
    %18 = vsyncpa [#allocation5], 0
    %19 = vsyncpa [#allocation8], 0
    loop: start=0, step=1, limit=4
    $region2: #{masked_mha_forward.3} parent=1 // loop_pre_header
      _
    $region3: #{masked_mha_forward.3} parent=1 // loop_header
      %s21 = sphi 0, %s25
      %p22 = scmp.ge.s32.totalorder %s21, 4
      %s28 = sphi 0, %s40
      %s29 = sphi 0, %s36
      %s30 = sphi 0, %s28
      %s31 = sphi 0, %s29
      %s32 = sphi 0, %s30
      %s33 = sphi 0, %s31
      %s45 = sphi 0, %s47
      %s48 = sphi 0, %s45
      %s49 = sphi 0, %s48
      %s65 = sphi 0, %s49
      %s73 = sphi 0, %s75
      %s76 = sphi 0, %s73
      %s77 = sphi 0, %s76
      %s93 = sphi 0, %s77
      %s101 = sphi 0, %s103
      %s104 = sphi 0, %s101
      %s105 = sphi 0, %s104
      %s121 = sphi 0, %s105
      %s125 = sphi 0, %s125
      %s127 = sphi 0, %s125
      %s128 = sphi 0, %s127
      %s142 = sphi 0, %s128
      %s146 = sphi 0, %s146
      %s148 = sphi 0, %s146
      %s149 = sphi 0, %s148
      %s163 = sphi 0, %s149
      %s167 = sphi 0, %s167
      %s169 = sphi 0, %s167
      %s170 = sphi 0, %s169
      %s184 = sphi 0, %s170
      %s188 = sphi 0, %s188
      %s190 = sphi 0, %s188
      %s191 = sphi 0, %s190
      %s205 = sphi 0, %s191
      %s209 = sphi 0, %s209
      %s211 = sphi 0, %s209
      %s212 = sphi 0, %s211
      %s226 = sphi 0, %s212
      %s230 = sphi 0, %s230
      %s232 = sphi 0, %s230
      %s233 = sphi 0, %s232
      %s247 = sphi 0, %s233
      %s255 = sphi 0, %s257
      %s258 = sphi 0, %s255
      %s259 = sphi 0, %s258
      %s275 = sphi 0, %s259
      %s283 = sphi 0, %s285
      %s286 = sphi 0, %s283
      %s287 = sphi 0, %s286
      %s303 = sphi 0, %s287
      %s311 = sphi 0, %s313
      %s314 = sphi 0, %s311
      %s315 = sphi 0, %s314
      %s331 = sphi 0, %s315
    $region4: #{masked_mha_forward.3} parent=1 // loop_header_branch
      %24 = sbr.rel (%p22) target = $region8
    $region5: #{masked_mha_forward.3} parent=1 // loop_body
      %s26 = ssub.s32 %s21, 1
      %s27 = ssub.s32 %s21, 2
      %s34 = sadd.s32 1, %s29
      %p35 = scmp.ge.s32.totalorder %s34, 1
      %s36 = scalar_select %p35, 0, %s34
      %s37 = sadd.s32 1, %s28
      %s38 = scalar_select %p35, %s37, %s28
      %p39 = scmp.ge.s32.totalorder %s38, 2
      %s40 = scalar_select %p39, 0, %s38
      %s41 = ssub.s32 %s28, %s40
      %s42 = ssub.s32 %s29, %s36
      %s43 = sor.u32 %s41, %s42
      %p44 = scmp.eq.s32.totalorder %s43, 0
      %s46 = sadd.s32 %s45, 1
      %s47 = scalar_select %p44, %s45, %s46
      %p50 = pneg %p44
      %p51 = scmp.eq.s32.totalorder %s21, 1
      %p52 = por %p50, %p51
      %p53 = scmp.ne.s32.totalorder %s45, %s48
      %p54 = scmp.eq.s32.totalorder %s21, 0
      %p55 = por %p53, %p54
      %p56 = scmp.ne.s32.totalorder %s45, %s48
      %p57 = scmp.eq.s32.totalorder %s26, 1
      %p58 = por %p56, %p57
      %p59 = scmp.ne.s32.totalorder %s48, %s49
      %p60 = scmp.eq.s32.totalorder %s26, 0
      %p61 = por %p59, %p60
      %p62 = scmp.ne.s32.totalorder %s48, %s49
      %p63 = scmp.eq.s32.totalorder %s27, 1
      %p64 = por %p62, %p63
      %p66 = scmp.ne.s32.totalorder %s49, %s65
      %p67 = scmp.eq.s32.totalorder %s27, 0
      %p68 = por %p66, %p67
      %s69 = ssub.s32 %s28, %s40
      %s70 = ssub.s32 %s29, %s36
      %s71 = sor.u32 %s69, %s70
      %p72 = scmp.eq.s32.totalorder %s71, 0
      %s74 = sadd.s32 %s73, 1
      %s75 = scalar_select %p72, %s73, %s74
      %p78 = pneg %p72
      %p79 = scmp.eq.s32.totalorder %s21, 1
      %p80 = por %p78, %p79
      %p81 = scmp.ne.s32.totalorder %s73, %s76
      %p82 = scmp.eq.s32.totalorder %s21, 0
      %p83 = por %p81, %p82
      %p84 = scmp.ne.s32.totalorder %s73, %s76
      %p85 = scmp.eq.s32.totalorder %s26, 1
      %p86 = por %p84, %p85
      %p87 = scmp.ne.s32.totalorder %s76, %s77
      %p88 = scmp.eq.s32.totalorder %s26, 0
      %p89 = por %p87, %p88
      %p90 = scmp.ne.s32.totalorder %s76, %s77
      %p91 = scmp.eq.s32.totalorder %s27, 1
      %p92 = por %p90, %p91
      %p94 = scmp.ne.s32.totalorder %s77, %s93
      %p95 = scmp.eq.s32.totalorder %s27, 0
      %p96 = por %p94, %p95
      %s97 = ssub.s32 %s28, %s40
      %s98 = ssub.s32 %s29, %s36
      %s99 = sor.u32 %s97, %s98
      %p100 = scmp.eq.s32.totalorder %s99, 0
      %s102 = sadd.s32 %s101, 1
      %s103 = scalar_select %p100, %s101, %s102
      %p106 = pneg %p100
      %p107 = scmp.eq.s32.totalorder %s21, 1
      %p108 = por %p106, %p107
      %p109 = scmp.ne.s32.totalorder %s101, %s104
      %p110 = scmp.eq.s32.totalorder %s21, 0
      %p111 = por %p109, %p110
      %p112 = scmp.ne.s32.totalorder %s101, %s104
      %p113 = scmp.eq.s32.totalorder %s26, 1
      %p114 = por %p112, %p113
      %p115 = scmp.ne.s32.totalorder %s104, %s105
      %p116 = scmp.eq.s32.totalorder %s26, 0
      %p117 = por %p115, %p116
      %p118 = scmp.ne.s32.totalorder %s104, %s105
      %p119 = scmp.eq.s32.totalorder %s27, 1
      %p120 = por %p118, %p119
      %p122 = scmp.ne.s32.totalorder %s105, %s121
      %p123 = scmp.eq.s32.totalorder %s27, 0
      %p124 = por %p122, %p123
      %s126 = sadd.s32 %s125, 1
      %p129 = scmp.eq.s32.totalorder %s21, 1
      %p130 = scmp.ne.s32.totalorder %s125, %s127
      %p131 = scmp.eq.s32.totalorder %s21, 0
      %p132 = por %p130, %p131
      %p133 = scmp.ne.s32.totalorder %s125, %s127
      %p134 = scmp.eq.s32.totalorder %s26, 1
      %p135 = por %p133, %p134
      %p136 = scmp.ne.s32.totalorder %s127, %s128
      %p137 = scmp.eq.s32.totalorder %s26, 0
      %p138 = por %p136, %p137
      %p139 = scmp.ne.s32.totalorder %s127, %s128
      %p140 = scmp.eq.s32.totalorder %s27, 1
      %p141 = por %p139, %p140
      %p143 = scmp.ne.s32.totalorder %s128, %s142
      %p144 = scmp.eq.s32.totalorder %s27, 0
      %p145 = por %p143, %p144
      %s147 = sadd.s32 %s146, 1
      %p150 = scmp.eq.s32.totalorder %s21, 1
      %p151 = scmp.ne.s32.totalorder %s146, %s148
      %p152 = scmp.eq.s32.totalorder %s21, 0
      %p153 = por %p151, %p152
      %p154 = scmp.ne.s32.totalorder %s146, %s148
      %p155 = scmp.eq.s32.totalorder %s26, 1
      %p156 = por %p154, %p155
      %p157 = scmp.ne.s32.totalorder %s148, %s149
      %p158 = scmp.eq.s32.totalorder %s26, 0
      %p159 = por %p157, %p158
      %p160 = scmp.ne.s32.totalorder %s148, %s149
      %p161 = scmp.eq.s32.totalorder %s27, 1
      %p162 = por %p160, %p161
      %p164 = scmp.ne.s32.totalorder %s149, %s163
      %p165 = scmp.eq.s32.totalorder %s27, 0
      %p166 = por %p164, %p165
      %s168 = sadd.s32 %s167, 1
      %p171 = scmp.eq.s32.totalorder %s21, 1
      %p172 = scmp.ne.s32.totalorder %s167, %s169
      %p173 = scmp.eq.s32.totalorder %s21, 0
      %p174 = por %p172, %p173
      %p175 = scmp.ne.s32.totalorder %s167, %s169
      %p176 = scmp.eq.s32.totalorder %s26, 1
      %p177 = por %p175, %p176
      %p178 = scmp.ne.s32.totalorder %s169, %s170
      %p179 = scmp.eq.s32.totalorder %s26, 0
      %p180 = por %p178, %p179
      %p181 = scmp.ne.s32.totalorder %s169, %s170
      %p182 = scmp.eq.s32.totalorder %s27, 1
      %p183 = por %p181, %p182
      %p185 = scmp.ne.s32.totalorder %s170, %s184
      %p186 = scmp.eq.s32.totalorder %s27, 0
      %p187 = por %p185, %p186
      %s189 = sadd.s32 %s188, 1
      %p192 = scmp.eq.s32.totalorder %s21, 1
      %p193 = scmp.ne.s32.totalorder %s188, %s190
      %p194 = scmp.eq.s32.totalorder %s21, 0
      %p195 = por %p193, %p194
      %p196 = scmp.ne.s32.totalorder %s188, %s190
      %p197 = scmp.eq.s32.totalorder %s26, 1
      %p198 = por %p196, %p197
      %p199 = scmp.ne.s32.totalorder %s190, %s191
      %p200 = scmp.eq.s32.totalorder %s26, 0
      %p201 = por %p199, %p200
      %p202 = scmp.ne.s32.totalorder %s190, %s191
      %p203 = scmp.eq.s32.totalorder %s27, 1
      %p204 = por %p202, %p203
      %p206 = scmp.ne.s32.totalorder %s191, %s205
      %p207 = scmp.eq.s32.totalorder %s27, 0
      %p208 = por %p206, %p207
      %s210 = sadd.s32 %s209, 1
      %p213 = scmp.eq.s32.totalorder %s21, 1
      %p214 = scmp.ne.s32.totalorder %s209, %s211
      %p215 = scmp.eq.s32.totalorder %s21, 0
      %p216 = por %p214, %p215
      %p217 = scmp.ne.s32.totalorder %s209, %s211
      %p218 = scmp.eq.s32.totalorder %s26, 1
      %p219 = por %p217, %p218
      %p220 = scmp.ne.s32.totalorder %s211, %s212
      %p221 = scmp.eq.s32.totalorder %s26, 0
      %p222 = por %p220, %p221
      %p223 = scmp.ne.s32.totalorder %s211, %s212
      %p224 = scmp.eq.s32.totalorder %s27, 1
      %p225 = por %p223, %p224
      %p227 = scmp.ne.s32.totalorder %s212, %s226
      %p228 = scmp.eq.s32.totalorder %s27, 0
      %p229 = por %p227, %p228
      %s231 = sadd.s32 %s230, 1
      %p234 = scmp.eq.s32.totalorder %s21, 1
      %p235 = scmp.ne.s32.totalorder %s230, %s232
      %p236 = scmp.eq.s32.totalorder %s21, 0
      %p237 = por %p235, %p236
      %p238 = scmp.ne.s32.totalorder %s230, %s232
      %p239 = scmp.eq.s32.totalorder %s26, 1
      %p240 = por %p238, %p239
      %p241 = scmp.ne.s32.totalorder %s232, %s233
      %p242 = scmp.eq.s32.totalorder %s26, 0
      %p243 = por %p241, %p242
      %p244 = scmp.ne.s32.totalorder %s232, %s233
      %p245 = scmp.eq.s32.totalorder %s27, 1
      %p246 = por %p244, %p245
      %p248 = scmp.ne.s32.totalorder %s233, %s247
      %p249 = scmp.eq.s32.totalorder %s27, 0
      %p250 = por %p248, %p249
      %s251 = ssub.s32 %s28, %s40
      %s252 = ssub.s32 %s29, %s36
      %s253 = sor.u32 %s251, %s252
      %p254 = scmp.eq.s32.totalorder %s253, 0
      %s256 = sadd.s32 %s255, 1
      %s257 = scalar_select %p254, %s255, %s256
      %p260 = pneg %p254
      %p261 = scmp.eq.s32.totalorder %s21, 1
      %p262 = por %p260, %p261
      %p263 = scmp.ne.s32.totalorder %s255, %s258
      %p264 = scmp.eq.s32.totalorder %s21, 0
      %p265 = por %p263, %p264
      %p266 = scmp.ne.s32.totalorder %s255, %s258
      %p267 = scmp.eq.s32.totalorder %s26, 1
      %p268 = por %p266, %p267
      %p269 = scmp.ne.s32.totalorder %s258, %s259
      %p270 = scmp.eq.s32.totalorder %s26, 0
      %p271 = por %p269, %p270
      %p272 = scmp.ne.s32.totalorder %s258, %s259
      %p273 = scmp.eq.s32.totalorder %s27, 1
      %p274 = por %p272, %p273
      %p276 = scmp.ne.s32.totalorder %s259, %s275
      %p277 = scmp.eq.s32.totalorder %s27, 0
      %p278 = por %p276, %p277
      %s279 = ssub.s32 %s28, %s40
      %s280 = ssub.s32 %s29, %s36
      %s281 = sor.u32 %s279, %s280
      %p282 = scmp.eq.s32.totalorder %s281, 0
      %s284 = sadd.s32 %s283, 1
      %s285 = scalar_select %p282, %s283, %s284
      %p288 = pneg %p282
      %p289 = scmp.eq.s32.totalorder %s21, 1
      %p290 = por %p288, %p289
      %p291 = scmp.ne.s32.totalorder %s283, %s286
      %p292 = scmp.eq.s32.totalorder %s21, 0
      %p293 = por %p291, %p292
      %p294 = scmp.ne.s32.totalorder %s283, %s286
      %p295 = scmp.eq.s32.totalorder %s26, 1
      %p296 = por %p294, %p295
      %p297 = scmp.ne.s32.totalorder %s286, %s287
      %p298 = scmp.eq.s32.totalorder %s26, 0
      %p299 = por %p297, %p298
      %p300 = scmp.ne.s32.totalorder %s286, %s287
      %p301 = scmp.eq.s32.totalorder %s27, 1
      %p302 = por %p300, %p301
      %p304 = scmp.ne.s32.totalorder %s287, %s303
      %p305 = scmp.eq.s32.totalorder %s27, 0
      %p306 = por %p304, %p305
      %s307 = ssub.s32 %s28, %s40
      %s308 = ssub.s32 %s29, %s36
      %s309 = sor.u32 %s307, %s308
      %p310 = scmp.eq.s32.totalorder %s309, 0
      %s312 = sadd.s32 %s311, 1
      %s313 = scalar_select %p310, %s311, %s312
      %p316 = pneg %p310
      %p317 = scmp.eq.s32.totalorder %s21, 1
      %p318 = por %p316, %p317
      %p319 = scmp.ne.s32.totalorder %s311, %s314
      %p320 = scmp.eq.s32.totalorder %s21, 0
      %p321 = por %p319, %p320
      %p322 = scmp.ne.s32.totalorder %s311, %s314
      %p323 = scmp.eq.s32.totalorder %s26, 1
      %p324 = por %p322, %p323
      %p325 = scmp.ne.s32.totalorder %s314, %s315
      %p326 = scmp.eq.s32.totalorder %s26, 0
      %p327 = por %p325, %p326
      %p328 = scmp.ne.s32.totalorder %s314, %s315
      %p329 = scmp.eq.s32.totalorder %s27, 1
      %p330 = por %p328, %p329
      %p332 = scmp.ne.s32.totalorder %s315, %s331
      %p333 = scmp.eq.s32.totalorder %s27, 0
      %p334 = por %p332, %p333
      %p335 = scmp.le.s32.totalorder 1, %s21
      %p336 = scmp.lt.s32.totalorder %s21, 3
      %p337 = pnand %p335, %p336
      %p338 = pneg %p337
      // Predicated region
      $region9: #{masked_mha_forward.3} parent=5 // pred_check
        _
      $region10: #{masked_mha_forward.3} parent=5 // pred_check_branch
        %340 = sbr.rel (%p337) target = $region12
      $region11: #{masked_mha_forward.3} parent=5 // pred_region
        %s341 = ssub.s32 %s21, 1
        // Predicated region
        $region13: #{masked_mha_forward.3} parent=11 // pred_check
          %p342 = pneg %p138
        $region14: #{masked_mha_forward.3} parent=11 // pred_check_branch
          %344 = sbr.rel (%p342) target = $region16
        $region15: #{masked_mha_forward.3} parent=11 // pred_region
          %s346 = ssub.s32 512, 512
          %347 = vsyncadd [#allocation3], %s346
          %s348 = sshll.u32 [#allocation2], 4
          %s349 = int_to_ptr.vmem [resolvable:$true] %s348
          %354 = dma.hbm_to_vmem [thread:$0]  %s3, 512, %s349, [#allocation3], 128, 128, 8
        $region16: #{masked_mha_forward.3} parent=11 // pred_fallthru
          _
        // Predicated region
        $region17: #{masked_mha_forward.3} parent=11 // pred_check
          %p355 = pneg %p159
        $region18: #{masked_mha_forward.3} parent=11 // pred_check_branch
          %357 = sbr.rel (%p355) target = $region20
        $region19: #{masked_mha_forward.3} parent=11 // pred_region
          %s359 = ssub.s32 512, 512
          %360 = vsyncadd [#allocation5], %s359
          %s361 = sshll.u32 [#allocation4], 4
          %s362 = int_to_ptr.vmem [resolvable:$true] %s361
          %367 = dma.hbm_to_vmem [thread:$0]  %s4, 512, %s362, [#allocation5], 128, 128, 8
        $region20: #{masked_mha_forward.3} parent=11 // pred_fallthru
          _
        // Predicated region
        $region21: #{masked_mha_forward.3} parent=11 // pred_check
          %p368 = pneg %p180
        $region22: #{masked_mha_forward.3} parent=11 // pred_check_branch
          %370 = sbr.rel (%p368) target = $region24
        $region23: #{masked_mha_forward.3} parent=11 // pred_region
          %s372 = ssub.s32 512, 512
          %373 = vsyncadd [#allocation5], %s372
          %s374 = sshll.u32 [#allocation6], 4
          %s375 = int_to_ptr.vmem [resolvable:$true] %s374
          %380 = dma.hbm_to_vmem [thread:$0]  %s5, 512, %s375, [#allocation5], 128, 128, 8
        $region24: #{masked_mha_forward.3} parent=11 // pred_fallthru
          _
        // Predicated region
        $region25: #{masked_mha_forward.3} parent=11 // pred_check
          %p381 = pneg %p201
        $region26: #{masked_mha_forward.3} parent=11 // pred_check_branch
          %383 = sbr.rel (%p381) target = $region28
        $region27: #{masked_mha_forward.3} parent=11 // pred_region
          _
        $region28: #{masked_mha_forward.3} parent=11 // pred_fallthru
          _
        // Predicated region
        $region29: #{masked_mha_forward.3} parent=11 // pred_check
          %p384 = pneg %p222
        $region30: #{masked_mha_forward.3} parent=11 // pred_check_branch
          %386 = sbr.rel (%p384) target = $region32
        $region31: #{masked_mha_forward.3} parent=11 // pred_region
          _
        $region32: #{masked_mha_forward.3} parent=11 // pred_fallthru
          _
        // Predicated region
        $region33: #{masked_mha_forward.3} parent=11 // pred_check
          %p387 = pneg %p243
        $region34: #{masked_mha_forward.3} parent=11 // pred_check_branch
          %389 = sbr.rel (%p387) target = $region36
        $region35: #{masked_mha_forward.3} parent=11 // pred_region
          %s391 = ssub.s32 16, 16
          %392 = vsyncadd [#allocation8], %s391
          %s394 = sshll.u32 [#allocation7], 4
          %s395 = int_to_ptr.vmem [resolvable:$true] %s394
          %397 = dma.hbm_to_vmem [thread:$0]  %s8, 16, %s395, [#allocation8]
        $region36: #{masked_mha_forward.3} parent=11 // pred_fallthru
          _
      $region12: #{masked_mha_forward.3} parent=5 // pred_fallthru
        _
      %p398 = scmp.lt.s32.totalorder %s21, 2
      // Predicated region
      $region37: #{masked_mha_forward.3} parent=5 // pred_check
        %p399 = pneg %p398
      $region38: #{masked_mha_forward.3} parent=5 // pred_check_branch
        %401 = sbr.rel (%p399) target = $region40
      $region39: #{masked_mha_forward.3} parent=5 // pred_region
        // Predicated region
        $region41: #{masked_mha_forward.3} parent=39 // pred_check
          %p402 = pneg %p55
        $region42: #{masked_mha_forward.3} parent=39 // pred_check_branch
          %404 = sbr.rel (%p402) target = $region44
        $region43: #{masked_mha_forward.3} parent=39 // pred_region
          %p405 = scmp.lt.s32.totalorder %s28, 1
          %s406 = scalar_select %p405, %s28, 1
          %p407 = scmp.lt.s32.totalorder %s29, 0
          %s408 = scalar_select %p407, %s29, 0
          %s409 = sadd.s32 %s408, %s406
          %s410 = smul.addr %s409, 8
          %s411 = scalar_lea.vmem %s0, %s410
        $region44: #{masked_mha_forward.3} parent=39 // pred_fallthru
          _
        // Predicated region
        $region45: #{masked_mha_forward.3} parent=39 // pred_check
          %p412 = pneg %p83
        $region46: #{masked_mha_forward.3} parent=39 // pred_check_branch
          %414 = sbr.rel (%p412) target = $region48
        $region47: #{masked_mha_forward.3} parent=39 // pred_region
          %p415 = scmp.lt.s32.totalorder %s28, 1
          %s416 = scalar_select %p415, %s28, 1
          %p417 = scmp.lt.s32.totalorder %s29, 0
          %s418 = scalar_select %p417, %s29, 0
          %s419 = sadd.s32 %s418, %s416
          %s420 = smul.addr %s419, 8
          %s421 = scalar_lea.vmem %s1, %s420
        $region48: #{masked_mha_forward.3} parent=39 // pred_fallthru
          _
        // Predicated region
        $region49: #{masked_mha_forward.3} parent=39 // pred_check
          %p422 = pneg %p111
        $region50: #{masked_mha_forward.3} parent=39 // pred_check_branch
          %424 = sbr.rel (%p422) target = $region52
        $region51: #{masked_mha_forward.3} parent=39 // pred_region
          %p425 = scmp.lt.s32.totalorder %s28, 1
          %s426 = scalar_select %p425, %s28, 1
          %p427 = scmp.lt.s32.totalorder %s29, 0
          %s428 = scalar_select %p427, %s29, 0
          %s429 = sadd.s32 %s428, %s426
          %s430 = smul.addr %s429, 8
          %s431 = scalar_lea.vmem %s2, %s430
        $region52: #{masked_mha_forward.3} parent=39 // pred_fallthru
          _
      $region40: #{masked_mha_forward.3} parent=5 // pred_fallthru
        _
      %p432 = scmp.le.s32.totalorder 1, %s21
      %p433 = scmp.lt.s32.totalorder %s21, 3
      %p434 = pnand %p432, %p433
      %p435 = pneg %p434
      // Predicated region
      $region53: #{masked_mha_forward.3} parent=5 // pred_check
        _
      $region54: #{masked_mha_forward.3} parent=5 // pred_check_branch
        %437 = sbr.rel (%p434) target = $region56
      $region55: #{masked_mha_forward.3} parent=5 // pred_region
        %s438 = ssub.s32 %s21, 1
        // Predicated region
        $region57: #{masked_mha_forward.3} parent=55 // pred_check
          %p439 = pneg %p138
        $region58: #{masked_mha_forward.3} parent=55 // pred_check_branch
          %441 = sbr.rel (%p439) target = $region60
        $region59: #{masked_mha_forward.3} parent=55 // pred_region
          %442 = dma.done [#allocation3], 512
        $region60: #{masked_mha_forward.3} parent=55 // pred_fallthru
          _
        // Predicated region
        $region61: #{masked_mha_forward.3} parent=55 // pred_check
          %p443 = pneg %p159
        $region62: #{masked_mha_forward.3} parent=55 // pred_check_branch
          %445 = sbr.rel (%p443) target = $region64
        $region63: #{masked_mha_forward.3} parent=55 // pred_region
          %446 = dma.done [#allocation5], 512
        $region64: #{masked_mha_forward.3} parent=55 // pred_fallthru
          _
        // Predicated region
        $region65: #{masked_mha_forward.3} parent=55 // pred_check
          %p447 = pneg %p180
        $region66: #{masked_mha_forward.3} parent=55 // pred_check_branch
          %449 = sbr.rel (%p447) target = $region68
        $region67: #{masked_mha_forward.3} parent=55 // pred_region
          %450 = dma.done [#allocation5], 512
        $region68: #{masked_mha_forward.3} parent=55 // pred_fallthru
          _
        // Predicated region
        $region69: #{masked_mha_forward.3} parent=55 // pred_check
          %p451 = pneg %p243
        $region70: #{masked_mha_forward.3} parent=55 // pred_check_branch
          %453 = sbr.rel (%p451) target = $region72
        $region71: #{masked_mha_forward.3} parent=55 // pred_region
          %454 = dma.done [#allocation8], 16
        $region72: #{masked_mha_forward.3} parent=55 // pred_fallthru
          _
        %p455 = scmp.lt.s32.totalorder %s30, 1
        %s456 = scalar_select %p455, %s30, 1
        %p457 = scmp.lt.s32.totalorder %s31, 0
        %s458 = scalar_select %p457, %s31, 0
        %s459 = sadd.s32 %s458, %s456
        %s460 = smul.addr %s459, 8
        %s461 = scalar_lea.vmem %s0, %s460
        %p462 = pneg %p61
        %p463 = pneg %p58
        %p464 = scmp.lt.s32.totalorder %s30, 1
        %s465 = scalar_select %p464, %s30, 1
        %p466 = scmp.lt.s32.totalorder %s31, 0
        %s467 = scalar_select %p466, %s31, 0
        %s468 = sadd.s32 %s467, %s465
        %s469 = smul.addr %s468, 8
        %s470 = scalar_lea.vmem %s1, %s469
        %p471 = pneg %p89
        %p472 = pneg %p86
        %p473 = scmp.lt.s32.totalorder %s30, 1
        %s474 = scalar_select %p473, %s30, 1
        %p475 = scmp.lt.s32.totalorder %s31, 0
        %s476 = scalar_select %p475, %s31, 0
        %s477 = sadd.s32 %s476, %s474
        %s478 = smul.addr %s477, 8
        %s479 = scalar_lea.vmem %s2, %s478
        %p480 = pneg %p117
        %p481 = pneg %p114
        %p482 = pneg %p138
        %p483 = pneg %p135
        %p484 = pneg %p159
        %p485 = pneg %p156
        %p486 = pneg %p180
        %p487 = pneg %p177
        %p488 = pneg %p201
        %p489 = pneg %p198
        %p490 = pneg %p222
        %p491 = pneg %p219
        %p492 = pneg %p243
        %p493 = pneg %p240
        %p494 = pneg %p271
        %p495 = pneg %p268
        %p496 = scmp.lt.s32.totalorder %s30, 1
        %s497 = scalar_select %p496, %s30, 1
        %p498 = scmp.lt.s32.totalorder %s31, 0
        %s499 = scalar_select %p498, %s31, 0
        %s500 = smul.addr %s497, 4
        %s501 = sadd.s32 %s499, %s500
        %s502 = smul.addr %s501, 8
        %s503 = scalar_lea.vmem %s9, %s502
        %p504 = pneg %p299
        %p505 = pneg %p296
        %p506 = scmp.lt.s32.totalorder %s30, 1
        %s507 = scalar_select %p506, %s30, 1
        %p508 = scmp.lt.s32.totalorder %s31, 0
        %s509 = scalar_select %p508, %s31, 0
        %s510 = smul.addr %s507, 4
        %s511 = sadd.s32 %s509, %s510
        %s512 = smul.addr %s511, 8
        %s513 = scalar_lea.vmem %s10, %s512
        %p514 = pneg %p327
        %p515 = pneg %p324
        %p516 = scmp.lt.s32.totalorder %s30, 1
        %s517 = scalar_select %p516, %s30, 1
        %p518 = scmp.lt.s32.totalorder %s31, 0
        %s519 = scalar_select %p518, %s31, 0
        %s520 = smul.addr %s517, 4
        %s521 = sadd.s32 %s519, %s520
        %s522 = smul.addr %s521, 8
        %s523 = scalar_lea.vmem %s11, %s522
        %p524 = scmp.lt.s32.totalorder %s30, 1
        %s525 = scalar_select %p524, %s30, 1
        %p526 = scmp.lt.s32.totalorder %s31, 0
        %s527 = scalar_select %p526, %s31, 0
        %s528 = sadd.s32 %s527, %s525
        %s529 = smul.addr %s528, 8
        %s530 = scalar_lea.vmem %s0, %s529
        %p531 = scmp.lt.s32.totalorder %s30, 1
        %s532 = scalar_select %p531, %s30, 1
        %p533 = scmp.lt.s32.totalorder %s31, 0
        %s534 = scalar_select %p533, %s31, 0
        %s535 = sadd.s32 %s534, %s532
        %s536 = smul.addr %s535, 8
        %s537 = scalar_lea.vmem %s1, %s536
        %p538 = scmp.lt.s32.totalorder %s30, 1
        %s539 = scalar_select %p538, %s30, 1
        %p540 = scmp.lt.s32.totalorder %s31, 0
        %s541 = scalar_select %p540, %s31, 0
        %s542 = sadd.s32 %s541, %s539
        %s543 = smul.addr %s542, 8
        %s544 = scalar_lea.vmem %s2, %s543
        %p545 = scmp.lt.s32.totalorder %s30, 1
        %s546 = scalar_select %p545, %s30, 1
        %p547 = scmp.lt.s32.totalorder %s31, 0
        %s548 = scalar_select %p547, %s31, 0
        %s549 = smul.addr %s546, 4
        %s550 = sadd.s32 %s548, %s549
        %s551 = smul.addr %s550, 8
        %s552 = scalar_lea.vmem %s9, %s551
        %p553 = scmp.lt.s32.totalorder %s30, 1
        %s554 = scalar_select %p553, %s30, 1
        %p555 = scmp.lt.s32.totalorder %s31, 0
        %s556 = scalar_select %p555, %s31, 0
        %s557 = smul.addr %s554, 4
        %s558 = sadd.s32 %s556, %s557
        %s559 = smul.addr %s558, 8
        %s560 = scalar_lea.vmem %s10, %s559
        %p561 = scmp.lt.s32.totalorder %s30, 1
        %s562 = scalar_select %p561, %s30, 1
        %p563 = scmp.lt.s32.totalorder %s31, 0
        %s564 = scalar_select %p563, %s31, 0
        %s565 = smul.addr %s562, 4
        %s566 = sadd.s32 %s564, %s565
        %s567 = smul.addr %s566, 8
        %s568 = scalar_lea.vmem %s11, %s567
        %v569 = vld [vmem:[%s530] sm:$0xff]
        %v570 = vld [vmem:[#allocation2] sm:$0xff]
        %v571 = vld [vmem:[#allocation2 + $0x8] sm:$0xff]
        %v572 = vld [vmem:[#allocation2 + $0x10] sm:$0xff]
        %v573 = vld [vmem:[#allocation2 + $0x18] sm:$0xff]
        %v574 = vld [vmem:[%s6] sm:$0x1]
        %v576 = vlaneseq
        %v577 = vshrl.u32 %v576, 7
        %v578 = vsub.s32 0, %v577
        %v579 = vrot.slane %v574, %v578
        %vm581 = vcmask 261120
        %v583 = vsel %vm581, %v569, 0
        %585 = vmatprep.subr.mxu0 0.0
        %586 = vmatpush1.msra.mxu0 %v570
        %587 = vmatprep.subr.mxu0 0.0
        %588 = vmatpush1.msra.mxu0 %v571
        %589 = vmatprep.subr.mxu0 0.0
        %590 = vmatpush1.msra.mxu0 %v572
        %591 = vmatprep.subr.mxu0 0.0
        %592 = vmatpush1.msra.mxu0 %v573
        %593 = vmatprep.subr.mxu0 0.0
        %594 = vmatpush1.msra.mxu0 0.0
        %595 = vmatprep.subr.mxu0 0.0
        %596 = vmatpush1.msra.mxu0 0.0
        %597 = vmatprep.subr.mxu0 0.0
        %598 = vmatpush1.msra.mxu0 0.0
        %599 = vmatprep.subr.mxu0 0.0
        %600 = vmatpush1.msra.mxu0 0.0
        %601 = vmatprep.subr.mxu0 0.0
        %602 = vmatpush1.msra.mxu0 0.0
        %603 = vmatprep.subr.mxu0 0.0
        %604 = vmatpush1.msra.mxu0 0.0
        %605 = vmatprep.subr.mxu0 0.0
        %606 = vmatpush1.msra.mxu0 0.0
        %607 = vmatprep.subr.mxu0 0.0
        %608 = vmatpush1.msra.mxu0 0.0
        %609 = vmatprep.subr.mxu0 0.0
        %610 = vmatpush1.msra.mxu0 0.0
        %611 = vmatprep.subr.mxu0 0.0
        %612 = vmatpush1.msra.mxu0 0.0
        %613 = vmatprep.subr.mxu0 0.0
        %614 = vmatpush1.msra.mxu0 0.0
        %615 = vmatprep.subr.mxu0 0.0
        %616 = vmatpush1.msra.mxu0 0.0
        %617 = vmatprep.subr.mxu0 0.0
        %618 = vmatpush1.msra.mxu0 0.0
        %619 = vmatprep.subr.mxu0 0.0
        %620 = vmatpush1.msra.mxu0 0.0
        %621 = vmatprep.subr.mxu0 0.0
        %622 = vmatpush1.msra.mxu0 0.0
        %623 = vmatprep.subr.mxu0 0.0
        %624 = vmatpush1.msra.mxu0 0.0
        %625 = vmatprep.subr.mxu0 0.0
        %626 = vmatpush1.msra.mxu0 0.0
        %627 = vmatprep.subr.mxu0 0.0
        %628 = vmatpush1.msra.mxu0 0.0
        %629 = vmatprep.subr.mxu0 0.0
        %630 = vmatpush1.msra.mxu0 0.0
        %631 = vmatprep.subr.mxu0 0.0
        %632 = vmatpush1.msra.mxu0 0.0
        %633 = vmatprep.subr.mxu0 0.0
        %634 = vmatpush1.msra.mxu0 0.0
        %635 = vmatprep.subr.mxu0 0.0
        %636 = vmatpush1.msra.mxu0 0.0
        %637 = vmatprep.subr.mxu0 0.0
        %638 = vmatpush1.msra.mxu0 0.0
        %639 = vmatprep.subr.mxu0 0.0
        %640 = vmatpush1.msra.mxu0 0.0
        %641 = vmatprep.subr.mxu0 0.0
        %642 = vmatpush1.msra.mxu0 0.0
        %643 = vmatprep.subr.mxu0 0.0
        %644 = vmatpush1.msra.mxu0 0.0
        %645 = vmatprep.subr.mxu0 0.0
        %646 = vmatpush1.msra.mxu0 0.0
        %647 = vmatprep.subr.mxu0 0.0
        %648 = vmatpush1.msra.mxu0 0.0
        %649 = vmatprep.mubr.f32.mxu0 0.0
        %650 = vmatmul.mubr.f32.gmra.mrb[0].mxu0 %v583
        %v651 = vpop.f32.mrb[0].mxu0
        %v652 = vadd.f32 %v579, %v651
        %v653 = vpop.f32.mrb[0].mxu0
        %654 = vdwg.mxu0
        %v655 = vld [vmem:[%s537] sm:$0xff]
        %v656 = vld [vmem:[#allocation4] sm:$0xff]
        %v657 = vld [vmem:[#allocation4 + $0x8] sm:$0xff]
        %v658 = vld [vmem:[#allocation4 + $0x10] sm:$0xff]
        %v659 = vld [vmem:[#allocation4 + $0x18] sm:$0xff]
        %v660 = vld [vmem:[%s7] sm:$0x1]
        %v662 = vlaneseq
        %v663 = vshrl.u32 %v662, 7
        %v664 = vsub.s32 0, %v663
        %v665 = vrot.slane %v660, %v664
        %v668 = vsel %vm581, %v655, 0
        %670 = vmatprep.subr.mxu0 0.0
        %671 = vmatpush1.msra.mxu0 %v656
        %672 = vmatprep.subr.mxu0 0.0
        %673 = vmatpush1.msra.mxu0 %v657
        %674 = vmatprep.subr.mxu0 0.0
        %675 = vmatpush1.msra.mxu0 %v658
        %676 = vmatprep.subr.mxu0 0.0
        %677 = vmatpush1.msra.mxu0 %v659
        %678 = vmatprep.subr.mxu0 0.0
        %679 = vmatpush1.msra.mxu0 0.0
        %680 = vmatprep.subr.mxu0 0.0
        %681 = vmatpush1.msra.mxu0 0.0
        %682 = vmatprep.subr.mxu0 0.0
        %683 = vmatpush1.msra.mxu0 0.0
        %684 = vmatprep.subr.mxu0 0.0
        %685 = vmatpush1.msra.mxu0 0.0
        %686 = vmatprep.subr.mxu0 0.0
        %687 = vmatpush1.msra.mxu0 0.0
        %688 = vmatprep.subr.mxu0 0.0
        %689 = vmatpush1.msra.mxu0 0.0
        %690 = vmatprep.subr.mxu0 0.0
        %691 = vmatpush1.msra.mxu0 0.0
        %692 = vmatprep.subr.mxu0 0.0
        %693 = vmatpush1.msra.mxu0 0.0
        %694 = vmatprep.subr.mxu0 0.0
        %695 = vmatpush1.msra.mxu0 0.0
        %696 = vmatprep.subr.mxu0 0.0
        %697 = vmatpush1.msra.mxu0 0.0
        %698 = vmatprep.subr.mxu0 0.0
        %699 = vmatpush1.msra.mxu0 0.0
        %700 = vmatprep.subr.mxu0 0.0
        %701 = vmatpush1.msra.mxu0 0.0
        %702 = vmatprep.subr.mxu0 0.0
        %703 = vmatpush1.msra.mxu0 0.0
        %704 = vmatprep.subr.mxu0 0.0
        %705 = vmatpush1.msra.mxu0 0.0
        %706 = vmatprep.subr.mxu0 0.0
        %707 = vmatpush1.msra.mxu0 0.0
        %708 = vmatprep.subr.mxu0 0.0
        %709 = vmatpush1.msra.mxu0 0.0
        %710 = vmatprep.subr.mxu0 0.0
        %711 = vmatpush1.msra.mxu0 0.0
        %712 = vmatprep.subr.mxu0 0.0
        %713 = vmatpush1.msra.mxu0 0.0
        %714 = vmatprep.subr.mxu0 0.0
        %715 = vmatpush1.msra.mxu0 0.0
        %716 = vmatprep.subr.mxu0 0.0
        %717 = vmatpush1.msra.mxu0 0.0
        %718 = vmatprep.subr.mxu0 0.0
        %719 = vmatpush1.msra.mxu0 0.0
        %720 = vmatprep.subr.mxu0 0.0
        %721 = vmatpush1.msra.mxu0 0.0
        %722 = vmatprep.subr.mxu0 0.0
        %723 = vmatpush1.msra.mxu0 0.0
        %724 = vmatprep.subr.mxu0 0.0
        %725 = vmatpush1.msra.mxu0 0.0
        %726 = vmatprep.subr.mxu0 0.0
        %727 = vmatpush1.msra.mxu0 0.0
        %728 = vmatprep.subr.mxu0 0.0
        %729 = vmatpush1.msra.mxu0 0.0
        %730 = vmatprep.subr.mxu0 0.0
        %731 = vmatpush1.msra.mxu0 0.0
        %732 = vmatprep.subr.mxu0 0.0
        %733 = vmatpush1.msra.mxu0 0.0
        %734 = vmatprep.mubr.f32.mxu0 0.0
        %735 = vmatmul.mubr.f32.gmra.mrb[0].mxu0 %v668
        %v736 = vpop.f32.mrb[0].mxu0
        %v737 = vadd.f32 %v665, %v736
        %v738 = vpop.f32.mrb[0].mxu0
        %739 = vdwg.mxu0
        %v740 = vld [vmem:[%s544] sm:$0xff]
        %v741 = vld [vmem:[#allocation6] sm:$0xff]
        %v742 = vld [vmem:[#allocation6 + $0x8] sm:$0xff]
        %v743 = vld [vmem:[#allocation6 + $0x10] sm:$0xff]
        %v744 = vld [vmem:[#allocation6 + $0x18] sm:$0xff]
        %v745 = vld [vmem:[#allocation7] sm:$0x1]
        %v747 = vlaneseq
        %v748 = vshrl.u32 %v747, 7
        %v749 = vsub.s32 0, %v748
        %v750 = vrot.slane %v745, %v749
        %v753 = vsel %vm581, %v740, 0
        %755 = vmatprep.subr.mxu0 0.0
        %756 = vmatpush1.msra.mxu0 %v741
        %757 = vmatprep.subr.mxu0 0.0
        %758 = vmatpush1.msra.mxu0 %v742
        %759 = vmatprep.subr.mxu0 0.0
        %760 = vmatpush1.msra.mxu0 %v743
        %761 = vmatprep.subr.mxu0 0.0
        %762 = vmatpush1.msra.mxu0 %v744
        %763 = vmatprep.subr.mxu0 0.0
        %764 = vmatpush1.msra.mxu0 0.0
        %765 = vmatprep.subr.mxu0 0.0
        %766 = vmatpush1.msra.mxu0 0.0
        %767 = vmatprep.subr.mxu0 0.0
        %768 = vmatpush1.msra.mxu0 0.0
        %769 = vmatprep.subr.mxu0 0.0
        %770 = vmatpush1.msra.mxu0 0.0
        %771 = vmatprep.subr.mxu0 0.0
        %772 = vmatpush1.msra.mxu0 0.0
        %773 = vmatprep.subr.mxu0 0.0
        %774 = vmatpush1.msra.mxu0 0.0
        %775 = vmatprep.subr.mxu0 0.0
        %776 = vmatpush1.msra.mxu0 0.0
        %777 = vmatprep.subr.mxu0 0.0
        %778 = vmatpush1.msra.mxu0 0.0
        %779 = vmatprep.subr.mxu0 0.0
        %780 = vmatpush1.msra.mxu0 0.0
        %781 = vmatprep.subr.mxu0 0.0
        %782 = vmatpush1.msra.mxu0 0.0
        %783 = vmatprep.subr.mxu0 0.0
        %784 = vmatpush1.msra.mxu0 0.0
        %785 = vmatprep.subr.mxu0 0.0
        %786 = vmatpush1.msra.mxu0 0.0
        %787 = vmatprep.subr.mxu0 0.0
        %788 = vmatpush1.msra.mxu0 0.0
        %789 = vmatprep.subr.mxu0 0.0
        %790 = vmatpush1.msra.mxu0 0.0
        %791 = vmatprep.subr.mxu0 0.0
        %792 = vmatpush1.msra.mxu0 0.0
        %793 = vmatprep.subr.mxu0 0.0
        %794 = vmatpush1.msra.mxu0 0.0
        %795 = vmatprep.subr.mxu0 0.0
        %796 = vmatpush1.msra.mxu0 0.0
        %797 = vmatprep.subr.mxu0 0.0
        %798 = vmatpush1.msra.mxu0 0.0
        %799 = vmatprep.subr.mxu0 0.0
        %800 = vmatpush1.msra.mxu0 0.0
        %801 = vmatprep.subr.mxu0 0.0
        %802 = vmatpush1.msra.mxu0 0.0
        %803 = vmatprep.subr.mxu0 0.0
        %804 = vmatpush1.msra.mxu0 0.0
        %805 = vmatprep.subr.mxu0 0.0
        %806 = vmatpush1.msra.mxu0 0.0
        %807 = vmatprep.subr.mxu0 0.0
        %808 = vmatpush1.msra.mxu0 0.0
        %809 = vmatprep.subr.mxu0 0.0
        %810 = vmatpush1.msra.mxu0 0.0
        %811 = vmatprep.subr.mxu0 0.0
        %812 = vmatpush1.msra.mxu0 0.0
        %813 = vmatprep.subr.mxu0 0.0
        %814 = vmatpush1.msra.mxu0 0.0
        %815 = vmatprep.subr.mxu0 0.0
        %816 = vmatpush1.msra.mxu0 0.0
        %817 = vmatprep.subr.mxu0 0.0
        %818 = vmatpush1.msra.mxu0 0.0
        %819 = vmatprep.mubr.f32.mxu0 0.0
        %820 = vmatmul.mubr.f32.gmra.mrb[0].mxu0 %v753
        %v821 = vpop.f32.mrb[0].mxu0
        %v822 = vadd.f32 %v750, %v821
        %v823 = vpop.f32.mrb[0].mxu0
        %824 = vdwg.mxu0
        %vm825 = vcmask 64512
        %826 = vst.msk [vmem:[%s552] sm:$0xff] %vm825, %v652
        %827 = vst.msk [vmem:[%s560] sm:$0xff] %vm825, %v737
        %828 = vst.msk [vmem:[%s568] sm:$0xff] %vm825, %v822
        %830 = vrot.lane.b32.xlu0 %v652, 120
        %v831 = vpop.permute.xlu0 %830
        %s833 = scalar_lea.vmem %s552, 8
        %834 = vst.msk [vmem:[%s833] sm:$0xff] %vm825, %v831
        %836 = vrot.lane.b32.xlu0 %v737, 120
        %v837 = vpop.permute.xlu0 %836
        %s839 = scalar_lea.vmem %s560, 8
        %840 = vst.msk [vmem:[%s839] sm:$0xff] %vm825, %v837
        %842 = vrot.lane.b32.xlu0 %v822, 120
        %v843 = vpop.permute.xlu0 %842
        %s845 = scalar_lea.vmem %s568, 8
        %846 = vst.msk [vmem:[%s845] sm:$0xff] %vm825, %v843
        %847 = vrot.lane.b32.xlu0 %v652, 112
        %v848 = vpop.permute.xlu0 %847
        %s850 = scalar_lea.vmem %s552, 16
        %851 = vst.msk [vmem:[%s850] sm:$0xff] %vm825, %v848
        %852 = vrot.lane.b32.xlu0 %v737, 112
        %v853 = vpop.permute.xlu0 %852
        %s855 = scalar_lea.vmem %s560, 16
        %856 = vst.msk [vmem:[%s855] sm:$0xff] %vm825, %v853
        %857 = vrot.lane.b32.xlu0 %v822, 112
        %v858 = vpop.permute.xlu0 %857
        %s860 = scalar_lea.vmem %s568, 16
        %861 = vst.msk [vmem:[%s860] sm:$0xff] %vm825, %v858
        %862 = vrot.lane.b32.xlu0 %v652, 104
        %v863 = vpop.permute.xlu0 %862
        %s865 = scalar_lea.vmem %s552, 24
        %866 = vst.msk [vmem:[%s865] sm:$0xff] %vm825, %v863
        %867 = vrot.lane.b32.xlu0 %v737, 104
        %v868 = vpop.permute.xlu0 %867
        %s870 = scalar_lea.vmem %s560, 24
        %871 = vst.msk [vmem:[%s870] sm:$0xff] %vm825, %v868
        %872 = vrot.lane.b32.xlu0 %v822, 104
        %v873 = vpop.permute.xlu0 %872
        %s875 = scalar_lea.vmem %s568, 24
        %876 = vst.msk [vmem:[%s875] sm:$0xff] %vm825, %v873
        %p877 = scmp.lt.s32.totalorder %s30, 1
        %s878 = scalar_select %p877, %s30, 1
        %p879 = scmp.lt.s32.totalorder %s31, 0
        %s880 = scalar_select %p879, %s31, 0
        %s881 = smul.addr %s878, 4
        %s882 = sadd.s32 %s880, %s881
        %s883 = smul.addr %s882, 8
        %s884 = scalar_lea.vmem %s9, %s883
        %p885 = scmp.lt.s32.totalorder %s30, 1
        %s886 = scalar_select %p885, %s30, 1
        %p887 = scmp.lt.s32.totalorder %s31, 0
        %s888 = scalar_select %p887, %s31, 0
        %s889 = smul.addr %s886, 4
        %s890 = sadd.s32 %s888, %s889
        %s891 = smul.addr %s890, 8
        %s892 = scalar_lea.vmem %s10, %s891
        %p893 = scmp.lt.s32.totalorder %s30, 1
        %s894 = scalar_select %p893, %s30, 1
        %p895 = scmp.lt.s32.totalorder %s31, 0
        %s896 = scalar_select %p895, %s31, 0
        %s897 = smul.addr %s894, 4
        %s898 = sadd.s32 %s896, %s897
        %s899 = smul.addr %s898, 8
        %s900 = scalar_lea.vmem %s11, %s899
        // Predicated region
        $region73: #{masked_mha_forward.3} parent=55 // pred_check
          %p901 = pneg %p268
        $region74: #{masked_mha_forward.3} parent=55 // pred_check_branch
          %903 = sbr.rel (%p901) target = $region76
        $region75: #{masked_mha_forward.3} parent=55 // pred_region
          _
        $region76: #{masked_mha_forward.3} parent=55 // pred_fallthru
          _
        // Predicated region
        $region77: #{masked_mha_forward.3} parent=55 // pred_check
          %p904 = pneg %p296
        $region78: #{masked_mha_forward.3} parent=55 // pred_check_branch
          %906 = sbr.rel (%p904) target = $region80
        $region79: #{masked_mha_forward.3} parent=55 // pred_region
          _
        $region80: #{masked_mha_forward.3} parent=55 // pred_fallthru
          _
        // Predicated region
        $region81: #{masked_mha_forward.3} parent=55 // pred_check
          %p907 = pneg %p324
        $region82: #{masked_mha_forward.3} parent=55 // pred_check_branch
          %909 = sbr.rel (%p907) target = $region84
        $region83: #{masked_mha_forward.3} parent=55 // pred_region
          _
        $region84: #{masked_mha_forward.3} parent=55 // pred_fallthru
          _
      $region56: #{masked_mha_forward.3} parent=5 // pred_fallthru
        _
      %p910 = scmp.le.s32.totalorder 2, %s21
      // Predicated region
      $region85: #{masked_mha_forward.3} parent=5 // pred_check
        %p911 = pneg %p910
      $region86: #{masked_mha_forward.3} parent=5 // pred_check_branch
        %913 = sbr.rel (%p911) target = $region88
      $region87: #{masked_mha_forward.3} parent=5 // pred_region
        %s914 = ssub.s32 %s21, 2
        // Predicated region
        $region89: #{masked_mha_forward.3} parent=87 // pred_check
          %p915 = pneg %p274
        $region90: #{masked_mha_forward.3} parent=87 // pred_check_branch
          %917 = sbr.rel (%p915) target = $region92
        $region91: #{masked_mha_forward.3} parent=87 // pred_region
          %p918 = scmp.lt.s32.totalorder %s32, 1
          %s919 = scalar_select %p918, %s32, 1
          %p920 = scmp.lt.s32.totalorder %s33, 0
          %s921 = scalar_select %p920, %s33, 0
          %s922 = smul.addr %s919, 4
          %s923 = sadd.s32 %s921, %s922
          %s924 = smul.addr %s923, 8
          %s925 = scalar_lea.vmem %s9, %s924
        $region92: #{masked_mha_forward.3} parent=87 // pred_fallthru
          _
        // Predicated region
        $region93: #{masked_mha_forward.3} parent=87 // pred_check
          %p926 = pneg %p302
        $region94: #{masked_mha_forward.3} parent=87 // pred_check_branch
          %928 = sbr.rel (%p926) target = $region96
        $region95: #{masked_mha_forward.3} parent=87 // pred_region
          %p929 = scmp.lt.s32.totalorder %s32, 1
          %s930 = scalar_select %p929, %s32, 1
          %p931 = scmp.lt.s32.totalorder %s33, 0
          %s932 = scalar_select %p931, %s33, 0
          %s933 = smul.addr %s930, 4
          %s934 = sadd.s32 %s932, %s933
          %s935 = smul.addr %s934, 8
          %s936 = scalar_lea.vmem %s10, %s935
        $region96: #{masked_mha_forward.3} parent=87 // pred_fallthru
          _
        // Predicated region
        $region97: #{masked_mha_forward.3} parent=87 // pred_check
          %p937 = pneg %p330
        $region98: #{masked_mha_forward.3} parent=87 // pred_check_branch
          %939 = sbr.rel (%p937) target = $region100
        $region99: #{masked_mha_forward.3} parent=87 // pred_region
          %p940 = scmp.lt.s32.totalorder %s32, 1
          %s941 = scalar_select %p940, %s32, 1
          %p942 = scmp.lt.s32.totalorder %s33, 0
          %s943 = scalar_select %p942, %s33, 0
          %s944 = smul.addr %s941, 4
          %s945 = sadd.s32 %s943, %s944
          %s946 = smul.addr %s945, 8
          %s947 = scalar_lea.vmem %s11, %s946
        $region100: #{masked_mha_forward.3} parent=87 // pred_fallthru
          _
      $region88: #{masked_mha_forward.3} parent=5 // pred_fallthru
        _
    $region6: #{masked_mha_forward.3} parent=1 // loop_footer
      %s25 = sadd.s32 1, %s21
    $region7: #{masked_mha_forward.3} parent=1 // loop_footer_branch
      %20 = sbr.rel target = $region3
    $region8: #{masked_mha_forward.3} parent=1 // loop_exit
      _
    %948 = vsyncpa [#allocation3], 1
    %s949 = scalar_lea.sflag [#allocation3], 1
    %950 = vsyncpa %s949, 1
    %951 = vsyncpa [#allocation5], 1
    %952 = vsyncpa [#allocation8], 1

</llo_original>
